<compile_context>
chip_gen: v7x
topology: tpu7x:2x2x1
jax: 0.10.0
libtpu: 0.0.40
codegen_flags: <defaults>
</compile_context>

<pallas_src>
import math
from functools import partial

import jax
import jax.numpy as jnp
from jax.experimental import pallas as pl
from jax.experimental.pallas import tpu as pltpu


# ----------------------------------------------------------------------------- 
# Tiling / VMEM sizing
# -----------------------------------------------------------------------------
def _vmem_capacity_bytes():
    try:
        return int(pltpu.get_tpu_info().vmem_capacity_bytes)
    except Exception:
        return 64 * 1024 * 1024  # v7x per-TensorCore floor; safe everywhere


def _step_vmem_bytes(b_t, oc_t, h_t, c_in, W, itemsize, vpu_path):
    """Per-grid-step VMEM working set (review item 2: count *everything*)."""
    ts2 = h_t * 2 * W                                 # duplicated-input lane width
    need = 0
    need += 2 * b_t * c_in * ts2 * itemsize           # x tile, double-buffered
    need += 2 * b_t * oc_t * 2 * ts2 * itemsize       # output tile, double-buffered
    need += 2 * (4 * oc_t * c_in) * itemsize          # weight block (2 pipeline bufs)
    need += 2 * (4 * oc_t) * 4                        # bias block (f32)
    need += 6 * oc_t * ts2 * 4                        # f32 pre-act / SiLU temporaries
    need += oc_t * 2 * ts2 * itemsize                 # assembled output slab
    if vpu_path:
        need += c_in * ts2 * 4                        # x cast to f32 (tiny-C_in path)
    return need


def _pick_tiles(B, c_in, c_out, H, W, itemsize, vpu_path, target_lanes=2048):
    """Pick (b_t, oc_t, h_t) honoring the (8,128) rules and the VMEM budget."""
    cap = _vmem_capacity_bytes()
    budget = int(cap * 0.4)                           # headroom for compiler scratch

    # Output-channel tile (review item 3): 256 matches the v6e/v7x MXU M dim and
    # is a multiple of 8 sublanes; full c_out when small.
    oc_t = c_out if c_out <= 256 else 256

    # Legal row-tile heights: full H, or a multiple of 4 (so the 2*h_t output
    # sublane extent is a multiple of 8) whose flattened lane width h_t*2W is a
    # multiple of 128 (lane-dense x / output tiles).
    legal = sorted(set([H] + [h for h in range(4, H, 4) if (h * 2 * W) % 128 == 0]))

    want_rows = max(1, -(-target_lanes // (2 * W)))
    h_t = legal[0]
    for h in legal:
        if h <= max(want_rows, legal[0]):
            h_t = max(h_t, h)

    # Small images / small spatial extent: fold batch images into one grid step
    # so each step still moves >= target_lanes lanes (review item 5).
    b_t = 1
    if h_t == H:
        ts2 = H * 2 * W
        if ts2 < target_lanes:
            b_t = max(1, min(B, target_lanes // max(ts2, 1)))

    # Shrink until the working set fits (keeps double-buffering intact on v7x).
    while _step_vmem_bytes(b_t, oc_t, h_t, c_in, W, itemsize, vpu_path) > budget:
        if b_t > 1:
            b_t -= 1
            continue
        smaller = [h for h in legal if h < h_t]
        if smaller:
            h_t = smaller[-1]
            continue
        if oc_t > 8:
            oc_t = max(8, oc_t // 2)
            continue
        break
    return b_t, oc_t, h_t, cap


# -----------------------------------------------------------------------------
# Kernel
# -----------------------------------------------------------------------------
def _make_kernel(b_t, h_t, tw, c_in, use_mxu):
    """tw = 2*W output-row width; the kernel tile spans h_t image rows."""
    ts2 = h_t * tw

    def kernel(x_ref, w_ref, b_ref, o_ref):
        # x_ref: (b_t, c_in, ts2)      column-duplicated input rows (flat h,2w+j)
        # w_ref: (2, 2, oc_t, c_in)    (i, j)-major 1x1-conv weights
        # b_ref: (2, 2, oc_t, 1)       (i, j)-major biases (f32)
        # o_ref: (b_t, oc_t, 2*ts2)    final output rows, flat (h, i, 2w+j)
        parity = jax.lax.broadcasted_iota(jnp.int32, (1, ts2), 1) % 2
        even = parity == 0                      # lane 2w+j has parity j

        for bb in range(b_t):
            xt = x_ref[bb]                      # (c_in, ts2)
            if not use_mxu:
                x32 = xt.astype(jnp.float32)

            acts = []
            for i in range(2):                  # output row parity (height)
                b0 = b_ref[i, 0].astype(jnp.float32)          # (oc_t, 1)
                b1 = b_ref[i, 1].astype(jnp.float32)
                if use_mxu:
                    p0 = jnp.dot(w_ref[i, 0], xt, preferred_element_type=jnp.float32)
                    p1 = jnp.dot(w_ref[i, 1], xt, preferred_element_type=jnp.float32)
                else:
                    # Tiny C_in: unrolled broadcast MACs on the VPU instead of a
                    # ~3%-utilized MXU pass.
                    w0 = w_ref[i, 0].astype(jnp.float32)      # (oc_t, c_in)
                    w1 = w_ref[i, 1].astype(jnp.float32)
                    oc_t = w0.shape[0]
                    p0 = jnp.zeros((oc_t, ts2), jnp.float32)
                    p1 = jnp.zeros((oc_t, ts2), jnp.float32)
                    for k in range(c_in):
                        xk = x32[k:k + 1, :]
                        p0 = p0 + w0[:, k:k + 1] * xk
                        p1 = p1 + w1[:, k:k + 1] * xk
                # j-interleave "for free": the input was column-duplicated, so
                # lane 2w+j already holds x[..., w]; just pick the j weights by
                # lane parity (pure VPU select, no XLU shuffle, no masked store).
                z = jnp.where(even, p0 + b0, p1 + b1)         # f32 pre-activation
                a = z * jax.nn.sigmoid(z)                     # SiLU (EUP)
                acts.append(a.astype(o_ref.dtype))

            # Assemble the final NCHW rows: flat index = h*4W + i*2W + (2w+j).
            # Static lane slices + one fully dense block store (review item 6).
            chunks = []
            for r in range(h_t):
                sl = slice(r * tw, (r + 1) * tw)
                chunks.append(acts[0][:, sl])   # row 2h   (i = 0)
                chunks.append(acts[1][:, sl])   # row 2h+1 (i = 1)
            o_ref[bb] = jnp.concatenate(chunks, axis=-1)

    return kernel


# -----------------------------------------------------------------------------
# Wrapper
# -----------------------------------------------------------------------------
@partial(jax.jit, static_argnames=("force_mxu", "target_lanes"))
def pixel_shuffle_upsample(x, weight, bias, *, force_mxu=None, target_lanes=2048):
    """PixelShuffleUpsample forward.

    x:      (B, C_in, H, W)   NCHW
    weight: (4*C_out, C_in)   1x1-conv weight (PyTorch [out, in] layout)
    bias:   (4*C_out,)
    returns (B, C_out, 2H, 2W)
    """
    B, c_in, H, W = x.shape
    oc4, c_in_w = weight.shape
    assert c_in_w == c_in and oc4 % 4 == 0
    c_out = oc4 // 4
    itemsize = jnp.dtype(x.dtype).itemsize
    tw = 2 * W
    S2 = H * tw

    use_mxu = bool(force_mxu) if force_mxu is not None else (c_in > 8)

    b_t, oc_t, h_t, vmem_cap = _pick_tiles(
        B, c_in, c_out, H, W, itemsize, vpu_path=not use_mxu,
        target_lanes=target_lanes)

    # Column-duplicated input: xd[b, k, h, 2w+j] = x[b, k, h, w].  One cheap,
    # contiguous XLA pass over the small input tensor; this is what lets the
    # kernel emit the PixelShuffle-d output with no lane shuffles at all.
    xd = jnp.repeat(x, 2, axis=-1).reshape(B, c_in, S2)

    # (i, j)-major parameters: w_perm[i, j, c, k] = weight[4c + 2i + j, k].
    w_perm = weight.reshape(c_out, 2, 2, c_in).transpose(1, 2, 0, 3).astype(x.dtype)
    b_perm = bias.reshape(c_out, 2, 2).transpose(1, 2, 0)[..., None].astype(jnp.float32)

    grid = (pl.cdiv(B, b_t), pl.cdiv(c_out, oc_t), pl.cdiv(H, h_t))
    kernel = _make_kernel(b_t, h_t, tw, c_in, use_mxu)

    vmem_need = _step_vmem_bytes(b_t, oc_t, h_t, c_in, W, itemsize, not use_mxu)
    vmem_limit = int(min(vmem_cap, min(128 << 20, max(vmem_need + (16 << 20), 32 << 20))))

    cost = pl.CostEstimate(
        flops=2 * 2 * B * oc4 * c_in * H * W,          # both lane parities computed
        transcendentals=2 * B * oc4 * H * W,           # sigmoid ~ exp + reciprocal
        bytes_accessed=itemsize * (B * c_in * S2 + B * 4 * c_out * H * W
                                   + oc4 * c_in) + 4 * oc4,
    )

    out_flat = pl.pallas_call(
        kernel,
        # Final output, viewed flat: (B, C_out, 2H*2W); reshape below is free.
        out_shape=jax.ShapeDtypeStruct((B, c_out, 4 * H * W), x.dtype),
        grid_spec=pltpu.PrefetchScalarGridSpec(
            num_scalar_prefetch=0,
            grid=grid,
            in_specs=[
                pl.BlockSpec((b_t, c_in, h_t * tw), lambda b, o, s: (b, 0, s)),
                pl.BlockSpec((2, 2, oc_t, c_in), lambda b, o, s: (0, 0, o, 0)),
                pl.BlockSpec((2, 2, oc_t, 1), lambda b, o, s: (0, 0, o, 0)),
            ],
            out_specs=pl.BlockSpec((b_t, oc_t, 2 * h_t * tw),
                                   lambda b, o, s: (b, o, s)),
        ),
        compiler_params=pltpu.CompilerParams(
            # No reduction axes; all parallel so v7x can shard across both
            # TensorCores (v5e/v6e: single core, flag is neutral).
            dimension_semantics=("parallel", "parallel", "parallel"),
            vmem_limit_bytes=vmem_limit,
        ),
        cost_estimate=cost,
    )(xd, w_perm, b_perm)

    return out_flat.reshape(B, c_out, 2 * H, 2 * W)


# -----------------------------------------------------------------------------
# Pure-JAX reference (PyTorch semantics): conv1x1 -> SiLU -> PixelShuffle(2)
# -----------------------------------------------------------------------------
def _reference(x, weight, bias):
    B, c_in, H, W = x.shape
    oc4 = weight.shape[0]
    c_out = oc4 // 4
    y = jnp.einsum("oc,bchw->bohw", weight, x, precision=jax.lax.Precision.HIGHEST)
    y = y + bias[None, :, None, None]
    y = y * jax.nn.sigmoid(y)
    y = y.reshape(B, c_out, 2, 2, H, W)
    y = jnp.transpose(y, (0, 1, 4, 2, 5, 3))
    return y.reshape(B, c_out, 2 * H, 2 * W)


if __name__ == "__main__":
    key = jax.random.PRNGKey(0)
    kx, kw, kb = jax.random.split(key, 3)

    B, C, H, W = 2, 4, 16, 16              # dim_out defaults to dim -> C_out = C
    x = jax.random.normal(kx, (B, C, H, W), dtype=jnp.float32)

    # Mirror PixelShuffleUpsample.init_conv_: kaiming-style (C_out, C_in) base
    # filter repeated 4x along output channels ('o -> (o 4)'), zero bias.
    base_w = jax.random.normal(kw, (C, C), dtype=jnp.float32) * math.sqrt(2.0 / C)
    weight = jnp.repeat(base_w, 4, axis=0)                  # (4*C, C)
    bias = jnp.zeros((4 * C,), dtype=jnp.float32)

    out = jax.block_until_ready(pixel_shuffle_upsample(x, weight, bias))
    ref = _reference(x, weight, bias)
    assert out.shape == (B, C, 2 * H, 2 * W)
    assert jnp.allclose(out, ref, atol=1e-4, rtol=1e-4), "mismatch (VPU path)"

    # Generic parameters (nonzero bias), exercising the MXU path as well.
    w2 = jax.random.normal(kw, (4 * C, C), dtype=jnp.float32) * 0.2
    b2 = jax.random.normal(kb, (4 * C,), dtype=jnp.float32) * 0.1
    out2 = jax.block_until_ready(pixel_shuffle_upsample(x, w2, b2, force_mxu=True))
    ref2 = _reference(x, w2, b2)
    assert jnp.allclose(out2, ref2, atol=1e-4, rtol=1e-4), "mismatch (MXU path)"

    print("KERNEL_OK")
</pallas_src>

<mosaic_0001>
module attributes {stable_mosaic.version = 11 : i64} {
  func.func @kernel(%arg0: i32, %arg1: i32, %arg2: i32, %arg3: memref<2x4x512xf32, #tpu.memory_space<vmem>>, %arg4: memref<2x2x4x4xf32, #tpu.memory_space<vmem>>, %arg5: memref<2x2x4x1xf32, #tpu.memory_space<vmem>>, %arg6: memref<2x4x1024xf32, #tpu.memory_space<vmem>>) attributes {dimension_semantics = [#tpu.dimension_semantics<parallel>, #tpu.dimension_semantics<parallel>, #tpu.dimension_semantics<parallel>], iteration_bounds = array<i64: 1, 1, 1>, scalar_prefetch = 0 : i64, scratch_operands = 0 : i64, tpu.core_type = #tpu.core_type<tc>, window_params = [{transform_indices = @transform_0, window_bounds = array<i64: 2, 4, 512>}, {transform_indices = @transform_1, window_bounds = array<i64: 2, 2, 4, 4>}, {transform_indices = @transform_2, window_bounds = array<i64: 2, 2, 4, 1>}, {transform_indices = @transform_3, window_bounds = array<i64: 2, 4, 1024>}]} {
    %0 = tpu.iota {dimensions = array<i32: 1>} : vector<1x512xi32>
    %c2_i32 = arith.constant 2 : i32
    %c0_i32 = arith.constant 0 : i32
    %1 = arith.cmpi eq, %c2_i32, %c0_i32 : i32
    %c1_i32 = arith.constant 1 : i32
    %2 = arith.select %1, %c1_i32, %c2_i32 : i32
    %3 = vector.broadcast %2 : i32 to vector<1x512xi32>
    %4 = arith.remsi %0, %3 : vector<1x512xi32>
    %c0_i32_0 = arith.constant 0 : i32
    %5 = vector.broadcast %c0_i32_0 : i32 to vector<1x512xi32>
    %6 = arith.cmpi ne, %4, %5 : vector<1x512xi32>
    %c0_i32_1 = arith.constant 0 : i32
    %7 = vector.broadcast %c0_i32_1 : i32 to vector<1x512xi32>
    %8 = arith.cmpi slt, %4, %7 : vector<1x512xi32>
    %c0_i32_2 = arith.constant 0 : i32
    %9 = arith.cmpi slt, %2, %c0_i32_2 : i32
    %10 = vector.broadcast %9 : i1 to vector<1x512xi1>
    %11 = vector.broadcast %10 : vector<1x512xi1> to vector<1x512xi1>
    %12 = arith.xori %8, %11 : vector<1x512xi1>
    %13 = arith.andi %12, %6 : vector<1x512xi1>
    %14 = vector.broadcast %2 : i32 to vector<1x512xi32>
    %15 = arith.addi %4, %14 : vector<1x512xi32>
    %16 = arith.select %13, %15, %4 : vector<1x512xi1>, vector<1x512xi32>
    %c0_i32_3 = arith.constant 0 : i32
    %17 = vector.broadcast %c0_i32_3 : i32 to vector<1x512xi32>
    %18 = arith.cmpi eq, %16, %17 : vector<1x512xi32>
    %c0 = arith.constant 0 : index
    %c0_4 = arith.constant 0 : index
    %c0_5 = arith.constant 0 : index
    %19 = vector.load %arg3[%c0, %c0_4, %c0_5] : memref<2x4x512xf32, #tpu.memory_space<vmem>>, vector<1x4x512xf32>
    %20 = vector.shape_cast %19 : vector<1x4x512xf32> to vector<4x512xf32>
    %c0_6 = arith.constant 0 : index
    %c0_7 = arith.constant 0 : index
    %c0_8 = arith.constant 0 : index
    %c0_9 = arith.constant 0 : index
    %21 = vector.load %arg5[%c0_6, %c0_7, %c0_8, %c0_9] : memref<2x2x4x1xf32, #tpu.memory_space<vmem>>, vector<1x1x4x1xf32>
    %22 = vector.shape_cast %21 : vector<1x1x4x1xf32> to vector<4x1xf32>
    %c0_10 = arith.constant 0 : index
    %c1 = arith.constant 1 : index
    %c0_11 = arith.constant 0 : index
    %c0_12 = arith.constant 0 : index
    %23 = vector.load %arg5[%c0_10, %c1, %c0_11, %c0_12] : memref<2x2x4x1xf32, #tpu.memory_space<vmem>>, vector<1x1x4x1xf32>
    %24 = vector.shape_cast %23 : vector<1x1x4x1xf32> to vector<4x1xf32>
    %c0_13 = arith.constant 0 : index
    %c0_14 = arith.constant 0 : index
    %c0_15 = arith.constant 0 : index
    %c0_16 = arith.constant 0 : index
    %25 = vector.load %arg4[%c0_13, %c0_14, %c0_15, %c0_16] : memref<2x2x4x4xf32, #tpu.memory_space<vmem>>, vector<1x1x4x4xf32>
    %26 = vector.shape_cast %25 : vector<1x1x4x4xf32> to vector<4x4xf32>
    %c0_17 = arith.constant 0 : index
    %c1_18 = arith.constant 1 : index
    %c0_19 = arith.constant 0 : index
    %c0_20 = arith.constant 0 : index
    %27 = vector.load %arg4[%c0_17, %c1_18, %c0_19, %c0_20] : memref<2x2x4x4xf32, #tpu.memory_space<vmem>>, vector<1x1x4x4xf32>
    %28 = vector.shape_cast %27 : vector<1x1x4x4xf32> to vector<4x4xf32>
    %cst = arith.constant 0.000000e+00 : f32
    %29 = vector.broadcast %cst : f32 to vector<4x512xf32>
    %cst_21 = arith.constant 0.000000e+00 : f32
    %30 = vector.broadcast %cst_21 : f32 to vector<4x512xf32>
    %31 = vector.extract_strided_slice %20 {offsets = [0, 0], sizes = [1, 512], strides = [1, 1]} : vector<4x512xf32> to vector<1x512xf32>
    %32 = vector.extract_strided_slice %26 {offsets = [0, 0], sizes = [4, 1], strides = [1, 1]} : vector<4x4xf32> to vector<4x1xf32>
    %33 = vector.broadcast %32 : vector<4x1xf32> to vector<4x512xf32>
    %34 = vector.broadcast %31 : vector<1x512xf32> to vector<4x512xf32>
    %35 = arith.mulf %33, %34 : vector<4x512xf32>
    %36 = arith.addf %29, %35 : vector<4x512xf32>
    %37 = vector.extract_strided_slice %28 {offsets = [0, 0], sizes = [4, 1], strides = [1, 1]} : vector<4x4xf32> to vector<4x1xf32>
    %38 = vector.broadcast %37 : vector<4x1xf32> to vector<4x512xf32>
    %39 = vector.broadcast %31 : vector<1x512xf32> to vector<4x512xf32>
    %40 = arith.mulf %38, %39 : vector<4x512xf32>
    %41 = arith.addf %30, %40 : vector<4x512xf32>
    %42 = vector.extract_strided_slice %20 {offsets = [1, 0], sizes = [1, 512], strides = [1, 1]} : vector<4x512xf32> to vector<1x512xf32>
    %43 = vector.extract_strided_slice %26 {offsets = [0, 1], sizes = [4, 1], strides = [1, 1]} : vector<4x4xf32> to vector<4x1xf32>
    %44 = vector.broadcast %43 : vector<4x1xf32> to vector<4x512xf32>
    %45 = vector.broadcast %42 : vector<1x512xf32> to vector<4x512xf32>
    %46 = arith.mulf %44, %45 : vector<4x512xf32>
    %47 = arith.addf %36, %46 : vector<4x512xf32>
    %48 = vector.extract_strided_slice %28 {offsets = [0, 1], sizes = [4, 1], strides = [1, 1]} : vector<4x4xf32> to vector<4x1xf32>
    %49 = vector.broadcast %48 : vector<4x1xf32> to vector<4x512xf32>
    %50 = vector.broadcast %42 : vector<1x512xf32> to vector<4x512xf32>
    %51 = arith.mulf %49, %50 : vector<4x512xf32>
    %52 = arith.addf %41, %51 : vector<4x512xf32>
    %53 = vector.extract_strided_slice %20 {offsets = [2, 0], sizes = [1, 512], strides = [1, 1]} : vector<4x512xf32> to vector<1x512xf32>
    %54 = vector.extract_strided_slice %26 {offsets = [0, 2], sizes = [4, 1], strides = [1, 1]} : vector<4x4xf32> to vector<4x1xf32>
    %55 = vector.broadcast %54 : vector<4x1xf32> to vector<4x512xf32>
    %56 = vector.broadcast %53 : vector<1x512xf32> to vector<4x512xf32>
    %57 = arith.mulf %55, %56 : vector<4x512xf32>
    %58 = arith.addf %47, %57 : vector<4x512xf32>
    %59 = vector.extract_strided_slice %28 {offsets = [0, 2], sizes = [4, 1], strides = [1, 1]} : vector<4x4xf32> to vector<4x1xf32>
    %60 = vector.broadcast %59 : vector<4x1xf32> to vector<4x512xf32>
    %61 = vector.broadcast %53 : vector<1x512xf32> to vector<4x512xf32>
    %62 = arith.mulf %60, %61 : vector<4x512xf32>
    %63 = arith.addf %52, %62 : vector<4x512xf32>
    %64 = vector.extract_strided_slice %20 {offsets = [3, 0], sizes = [1, 512], strides = [1, 1]} : vector<4x512xf32> to vector<1x512xf32>
    %65 = vector.extract_strided_slice %26 {offsets = [0, 3], sizes = [4, 1], strides = [1, 1]} : vector<4x4xf32> to vector<4x1xf32>
    %66 = vector.broadcast %65 : vector<4x1xf32> to vector<4x512xf32>
    %67 = vector.broadcast %64 : vector<1x512xf32> to vector<4x512xf32>
    %68 = arith.mulf %66, %67 : vector<4x512xf32>
    %69 = arith.addf %58, %68 : vector<4x512xf32>
    %70 = vector.extract_strided_slice %28 {offsets = [0, 3], sizes = [4, 1], strides = [1, 1]} : vector<4x4xf32> to vector<4x1xf32>
    %71 = vector.broadcast %70 : vector<4x1xf32> to vector<4x512xf32>
    %72 = vector.broadcast %64 : vector<1x512xf32> to vector<4x512xf32>
    %73 = arith.mulf %71, %72 : vector<4x512xf32>
    %74 = arith.addf %63, %73 : vector<4x512xf32>
    %75 = vector.broadcast %22 : vector<4x1xf32> to vector<4x512xf32>
    %76 = arith.addf %69, %75 : vector<4x512xf32>
    %77 = vector.broadcast %24 : vector<4x1xf32> to vector<4x512xf32>
    %78 = arith.addf %74, %77 : vector<4x512xf32>
    %79 = vector.shape_cast %18 : vector<1x512xi1> to vector<1x512xi1>
    %80 = vector.broadcast %79 : vector<1x512xi1> to vector<4x512xi1>
    %81 = arith.select %80, %76, %78 : vector<4x512xi1>, vector<4x512xf32>
    %82 = arith.negf %81 : vector<4x512xf32>
    %83 = math.exp %82 : vector<4x512xf32>
    %cst_22 = arith.constant 1.000000e+00 : f32
    %84 = vector.broadcast %cst_22 : f32 to vector<4x512xf32>
    %85 = arith.addf %84, %83 : vector<4x512xf32>
    %86 = arith.divf %84, %85 : vector<4x512xf32>
    %87 = arith.mulf %81, %86 : vector<4x512xf32>
    %c1_23 = arith.constant 1 : index
    %c0_24 = arith.constant 0 : index
    %c0_25 = arith.constant 0 : index
    %c0_26 = arith.constant 0 : index
    %88 = vector.load %arg5[%c1_23, %c0_24, %c0_25, %c0_26] : memref<2x2x4x1xf32, #tpu.memory_space<vmem>>, vector<1x1x4x1xf32>
    %89 = vector.shape_cast %88 : vector<1x1x4x1xf32> to vector<4x1xf32>
    %c1_27 = arith.constant 1 : index
    %c1_28 = arith.constant 1 : index
    %c0_29 = arith.constant 0 : index
    %c0_30 = arith.constant 0 : index
    %90 = vector.load %arg5[%c1_27, %c1_28, %c0_29, %c0_30] : memref<2x2x4x1xf32, #tpu.memory_space<vmem>>, vector<1x1x4x1xf32>
    %91 = vector.shape_cast %90 : vector<1x1x4x1xf32> to vector<4x1xf32>
    %c1_31 = arith.constant 1 : index
    %c0_32 = arith.constant 0 : index
    %c0_33 = arith.constant 0 : index
    %c0_34 = arith.constant 0 : index
    %92 = vector.load %arg4[%c1_31, %c0_32, %c0_33, %c0_34] : memref<2x2x4x4xf32, #tpu.memory_space<vmem>>, vector<1x1x4x4xf32>
    %93 = vector.shape_cast %92 : vector<1x1x4x4xf32> to vector<4x4xf32>
    %c1_35 = arith.constant 1 : index
    %c1_36 = arith.constant 1 : index
    %c0_37 = arith.constant 0 : index
    %c0_38 = arith.constant 0 : index
    %94 = vector.load %arg4[%c1_35, %c1_36, %c0_37, %c0_38] : memref<2x2x4x4xf32, #tpu.memory_space<vmem>>, vector<1x1x4x4xf32>
    %95 = vector.shape_cast %94 : vector<1x1x4x4xf32> to vector<4x4xf32>
    %cst_39 = arith.constant 0.000000e+00 : f32
    %96 = vector.broadcast %cst_39 : f32 to vector<4x512xf32>
    %cst_40 = arith.constant 0.000000e+00 : f32
    %97 = vector.broadcast %cst_40 : f32 to vector<4x512xf32>
    %98 = vector.extract_strided_slice %20 {offsets = [0, 0], sizes = [1, 512], strides = [1, 1]} : vector<4x512xf32> to vector<1x512xf32>
    %99 = vector.extract_strided_slice %93 {offsets = [0, 0], sizes = [4, 1], strides = [1, 1]} : vector<4x4xf32> to vector<4x1xf32>
    %100 = vector.broadcast %99 : vector<4x1xf32> to vector<4x512xf32>
    %101 = vector.broadcast %98 : vector<1x512xf32> to vector<4x512xf32>
    %102 = arith.mulf %100, %101 : vector<4x512xf32>
    %103 = arith.addf %96, %102 : vector<4x512xf32>
    %104 = vector.extract_strided_slice %95 {offsets = [0, 0], sizes = [4, 1], strides = [1, 1]} : vector<4x4xf32> to vector<4x1xf32>
    %105 = vector.broadcast %104 : vector<4x1xf32> to vector<4x512xf32>
    %106 = vector.broadcast %98 : vector<1x512xf32> to vector<4x512xf32>
    %107 = arith.mulf %105, %106 : vector<4x512xf32>
    %108 = arith.addf %97, %107 : vector<4x512xf32>
    %109 = vector.extract_strided_slice %20 {offsets = [1, 0], sizes = [1, 512], strides = [1, 1]} : vector<4x512xf32> to vector<1x512xf32>
    %110 = vector.extract_strided_slice %93 {offsets = [0, 1], sizes = [4, 1], strides = [1, 1]} : vector<4x4xf32> to vector<4x1xf32>
    %111 = vector.broadcast %110 : vector<4x1xf32> to vector<4x512xf32>
    %112 = vector.broadcast %109 : vector<1x512xf32> to vector<4x512xf32>
    %113 = arith.mulf %111, %112 : vector<4x512xf32>
    %114 = arith.addf %103, %113 : vector<4x512xf32>
    %115 = vector.extract_strided_slice %95 {offsets = [0, 1], sizes = [4, 1], strides = [1, 1]} : vector<4x4xf32> to vector<4x1xf32>
    %116 = vector.broadcast %115 : vector<4x1xf32> to vector<4x512xf32>
    %117 = vector.broadcast %109 : vector<1x512xf32> to vector<4x512xf32>
    %118 = arith.mulf %116, %117 : vector<4x512xf32>
    %119 = arith.addf %108, %118 : vector<4x512xf32>
    %120 = vector.extract_strided_slice %20 {offsets = [2, 0], sizes = [1, 512], strides = [1, 1]} : vector<4x512xf32> to vector<1x512xf32>
    %121 = vector.extract_strided_slice %93 {offsets = [0, 2], sizes = [4, 1], strides = [1, 1]} : vector<4x4xf32> to vector<4x1xf32>
    %122 = vector.broadcast %121 : vector<4x1xf32> to vector<4x512xf32>
    %123 = vector.broadcast %120 : vector<1x512xf32> to vector<4x512xf32>
    %124 = arith.mulf %122, %123 : vector<4x512xf32>
    %125 = arith.addf %114, %124 : vector<4x512xf32>
    %126 = vector.extract_strided_slice %95 {offsets = [0, 2], sizes = [4, 1], strides = [1, 1]} : vector<4x4xf32> to vector<4x1xf32>
    %127 = vector.broadcast %126 : vector<4x1xf32> to vector<4x512xf32>
    %128 = vector.broadcast %120 : vector<1x512xf32> to vector<4x512xf32>
    %129 = arith.mulf %127, %128 : vector<4x512xf32>
    %130 = arith.addf %119, %129 : vector<4x512xf32>
    %131 = vector.extract_strided_slice %20 {offsets = [3, 0], sizes = [1, 512], strides = [1, 1]} : vector<4x512xf32> to vector<1x512xf32>
    %132 = vector.extract_strided_slice %93 {offsets = [0, 3], sizes = [4, 1], strides = [1, 1]} : vector<4x4xf32> to vector<4x1xf32>
    %133 = vector.broadcast %132 : vector<4x1xf32> to vector<4x512xf32>
    %134 = vector.broadcast %131 : vector<1x512xf32> to vector<4x512xf32>
    %135 = arith.mulf %133, %134 : vector<4x512xf32>
    %136 = arith.addf %125, %135 : vector<4x512xf32>
    %137 = vector.extract_strided_slice %95 {offsets = [0, 3], sizes = [4, 1], strides = [1, 1]} : vector<4x4xf32> to vector<4x1xf32>
    %138 = vector.broadcast %137 : vector<4x1xf32> to vector<4x512xf32>
    %139 = vector.broadcast %131 : vector<1x512xf32> to vector<4x512xf32>
    %140 = arith.mulf %138, %139 : vector<4x512xf32>
    %141 = arith.addf %130, %140 : vector<4x512xf32>
    %142 = vector.broadcast %89 : vector<4x1xf32> to vector<4x512xf32>
    %143 = arith.addf %136, %142 : vector<4x512xf32>
    %144 = vector.broadcast %91 : vector<4x1xf32> to vector<4x512xf32>
    %145 = arith.addf %141, %144 : vector<4x512xf32>
    %146 = vector.shape_cast %18 : vector<1x512xi1> to vector<1x512xi1>
    %147 = vector.broadcast %146 : vector<1x512xi1> to vector<4x512xi1>
    %148 = arith.select %147, %143, %145 : vector<4x512xi1>, vector<4x512xf32>
    %149 = arith.negf %148 : vector<4x512xf32>
    %150 = math.exp %149 : vector<4x512xf32>
    %cst_41 = arith.constant 1.000000e+00 : f32
    %151 = vector.broadcast %cst_41 : f32 to vector<4x512xf32>
    %152 = arith.addf %151, %150 : vector<4x512xf32>
    %153 = arith.divf %151, %152 : vector<4x512xf32>
    %154 = arith.mulf %148, %153 : vector<4x512xf32>
    %155 = vector.extract_strided_slice %87 {offsets = [0, 0], sizes = [4, 32], strides = [1, 1]} : vector<4x512xf32> to vector<4x32xf32>
    %156 = vector.extract_strided_slice %154 {offsets = [0, 0], sizes = [4, 32], strides = [1, 1]} : vector<4x512xf32> to vector<4x32xf32>
    %157 = vector.extract_strided_slice %87 {offsets = [0, 32], sizes = [4, 32], strides = [1, 1]} : vector<4x512xf32> to vector<4x32xf32>
    %158 = vector.extract_strided_slice %154 {offsets = [0, 32], sizes = [4, 32], strides = [1, 1]} : vector<4x512xf32> to vector<4x32xf32>
    %159 = vector.extract_strided_slice %87 {offsets = [0, 64], sizes = [4, 32], strides = [1, 1]} : vector<4x512xf32> to vector<4x32xf32>
    %160 = vector.extract_strided_slice %154 {offsets = [0, 64], sizes = [4, 32], strides = [1, 1]} : vector<4x512xf32> to vector<4x32xf32>
    %161 = vector.extract_strided_slice %87 {offsets = [0, 96], sizes = [4, 32], strides = [1, 1]} : vector<4x512xf32> to vector<4x32xf32>
    %162 = vector.extract_strided_slice %154 {offsets = [0, 96], sizes = [4, 32], strides = [1, 1]} : vector<4x512xf32> to vector<4x32xf32>
    %163 = vector.extract_strided_slice %87 {offsets = [0, 128], sizes = [4, 32], strides = [1, 1]} : vector<4x512xf32> to vector<4x32xf32>
    %164 = vector.extract_strided_slice %154 {offsets = [0, 128], sizes = [4, 32], strides = [1, 1]} : vector<4x512xf32> to vector<4x32xf32>
    %165 = vector.extract_strided_slice %87 {offsets = [0, 160], sizes = [4, 32], strides = [1, 1]} : vector<4x512xf32> to vector<4x32xf32>
    %166 = vector.extract_strided_slice %154 {offsets = [0, 160], sizes = [4, 32], strides = [1, 1]} : vector<4x512xf32> to vector<4x32xf32>
    %167 = vector.extract_strided_slice %87 {offsets = [0, 192], sizes = [4, 32], strides = [1, 1]} : vector<4x512xf32> to vector<4x32xf32>
    %168 = vector.extract_strided_slice %154 {offsets = [0, 192], sizes = [4, 32], strides = [1, 1]} : vector<4x512xf32> to vector<4x32xf32>
    %169 = vector.extract_strided_slice %87 {offsets = [0, 224], sizes = [4, 32], strides = [1, 1]} : vector<4x512xf32> to vector<4x32xf32>
    %170 = vector.extract_strided_slice %154 {offsets = [0, 224], sizes = [4, 32], strides = [1, 1]} : vector<4x512xf32> to vector<4x32xf32>
    %171 = vector.extract_strided_slice %87 {offsets = [0, 256], sizes = [4, 32], strides = [1, 1]} : vector<4x512xf32> to vector<4x32xf32>
    %172 = vector.extract_strided_slice %154 {offsets = [0, 256], sizes = [4, 32], strides = [1, 1]} : vector<4x512xf32> to vector<4x32xf32>
    %173 = vector.extract_strided_slice %87 {offsets = [0, 288], sizes = [4, 32], strides = [1, 1]} : vector<4x512xf32> to vector<4x32xf32>
    %174 = vector.extract_strided_slice %154 {offsets = [0, 288], sizes = [4, 32], strides = [1, 1]} : vector<4x512xf32> to vector<4x32xf32>
    %175 = vector.extract_strided_slice %87 {offsets = [0, 320], sizes = [4, 32], strides = [1, 1]} : vector<4x512xf32> to vector<4x32xf32>
    %176 = vector.extract_strided_slice %154 {offsets = [0, 320], sizes = [4, 32], strides = [1, 1]} : vector<4x512xf32> to vector<4x32xf32>
    %177 = vector.extract_strided_slice %87 {offsets = [0, 352], sizes = [4, 32], strides = [1, 1]} : vector<4x512xf32> to vector<4x32xf32>
    %178 = vector.extract_strided_slice %154 {offsets = [0, 352], sizes = [4, 32], strides = [1, 1]} : vector<4x512xf32> to vector<4x32xf32>
    %179 = vector.extract_strided_slice %87 {offsets = [0, 384], sizes = [4, 32], strides = [1, 1]} : vector<4x512xf32> to vector<4x32xf32>
    %180 = vector.extract_strided_slice %154 {offsets = [0, 384], sizes = [4, 32], strides = [1, 1]} : vector<4x512xf32> to vector<4x32xf32>
    %181 = vector.extract_strided_slice %87 {offsets = [0, 416], sizes = [4, 32], strides = [1, 1]} : vector<4x512xf32> to vector<4x32xf32>
    %182 = vector.extract_strided_slice %154 {offsets = [0, 416], sizes = [4, 32], strides = [1, 1]} : vector<4x512xf32> to vector<4x32xf32>
    %183 = vector.extract_strided_slice %87 {offsets = [0, 448], sizes = [4, 32], strides = [1, 1]} : vector<4x512xf32> to vector<4x32xf32>
    %184 = vector.extract_strided_slice %154 {offsets = [0, 448], sizes = [4, 32], strides = [1, 1]} : vector<4x512xf32> to vector<4x32xf32>
    %185 = vector.extract_strided_slice %87 {offsets = [0, 480], sizes = [4, 32], strides = [1, 1]} : vector<4x512xf32> to vector<4x32xf32>
    %186 = vector.extract_strided_slice %154 {offsets = [0, 480], sizes = [4, 32], strides = [1, 1]} : vector<4x512xf32> to vector<4x32xf32>
    %187 = tpu.concatenate %155, %156, %157, %158, %159, %160, %161, %162, %163, %164, %165, %166, %167, %168, %169, %170 in 1 : vector<4x32xf32>, vector<4x32xf32>, vector<4x32xf32>, vector<4x32xf32>, vector<4x32xf32>, vector<4x32xf32>, vector<4x32xf32>, vector<4x32xf32>, vector<4x32xf32>, vector<4x32xf32>, vector<4x32xf32>, vector<4x32xf32>, vector<4x32xf32>, vector<4x32xf32>, vector<4x32xf32>, vector<4x32xf32> -> vector<4x512xf32>
    %188 = tpu.concatenate %171, %172, %173, %174, %175, %176, %177, %178, %179, %180, %181, %182, %183, %184, %185, %186 in 1 : vector<4x32xf32>, vector<4x32xf32>, vector<4x32xf32>, vector<4x32xf32>, vector<4x32xf32>, vector<4x32xf32>, vector<4x32xf32>, vector<4x32xf32>, vector<4x32xf32>, vector<4x32xf32>, vector<4x32xf32>, vector<4x32xf32>, vector<4x32xf32>, vector<4x32xf32>, vector<4x32xf32>, vector<4x32xf32> -> vector<4x512xf32>
    %189 = tpu.concatenate %187, %188 in 1 : vector<4x512xf32>, vector<4x512xf32> -> vector<4x1024xf32>
    %c0_42 = arith.constant 0 : index
    %c0_43 = arith.constant 0 : index
    %c0_44 = arith.constant 0 : index
    %190 = vector.load %arg6[%c0_42, %c0_43, %c0_44] : memref<2x4x1024xf32, #tpu.memory_space<vmem>>, vector<1x4x1024xf32>
    %191 = vector.shape_cast %190 : vector<1x4x1024xf32> to vector<4x1024xf32>
    %192 = vector.shape_cast %189 : vector<4x1024xf32> to vector<1x4x1024xf32>
    tpu.vector_store %arg6[%c0_42, %c0_43, %c0_44], %192 {strides = array<i32>} : memref<2x4x1024xf32, #tpu.memory_space<vmem>>, vector<1x4x1024xf32>,
    %c1_45 = arith.constant 1 : index
    %c0_46 = arith.constant 0 : index
    %c0_47 = arith.constant 0 : index
    %193 = vector.load %arg3[%c1_45, %c0_46, %c0_47] : memref<2x4x512xf32, #tpu.memory_space<vmem>>, vector<1x4x512xf32>
    %194 = vector.shape_cast %193 : vector<1x4x512xf32> to vector<4x512xf32>
    %c0_48 = arith.constant 0 : index
    %c0_49 = arith.constant 0 : index
    %c0_50 = arith.constant 0 : index
    %c0_51 = arith.constant 0 : index
    %195 = vector.load %arg5[%c0_48, %c0_49, %c0_50, %c0_51] : memref<2x2x4x1xf32, #tpu.memory_space<vmem>>, vector<1x1x4x1xf32>
    %196 = vector.shape_cast %195 : vector<1x1x4x1xf32> to vector<4x1xf32>
    %c0_52 = arith.constant 0 : index
    %c1_53 = arith.constant 1 : index
    %c0_54 = arith.constant 0 : index
    %c0_55 = arith.constant 0 : index
    %197 = vector.load %arg5[%c0_52, %c1_53, %c0_54, %c0_55] : memref<2x2x4x1xf32, #tpu.memory_space<vmem>>, vector<1x1x4x1xf32>
    %198 = vector.shape_cast %197 : vector<1x1x4x1xf32> to vector<4x1xf32>
    %c0_56 = arith.constant 0 : index
    %c0_57 = arith.constant 0 : index
    %c0_58 = arith.constant 0 : index
    %c0_59 = arith.constant 0 : index
    %199 = vector.load %arg4[%c0_56, %c0_57, %c0_58, %c0_59] : memref<2x2x4x4xf32, #tpu.memory_space<vmem>>, vector<1x1x4x4xf32>
    %200 = vector.shape_cast %199 : vector<1x1x4x4xf32> to vector<4x4xf32>
    %c0_60 = arith.constant 0 : index
    %c1_61 = arith.constant 1 : index
    %c0_62 = arith.constant 0 : index
    %c0_63 = arith.constant 0 : index
    %201 = vector.load %arg4[%c0_60, %c1_61, %c0_62, %c0_63] : memref<2x2x4x4xf32, #tpu.memory_space<vmem>>, vector<1x1x4x4xf32>
    %202 = vector.shape_cast %201 : vector<1x1x4x4xf32> to vector<4x4xf32>
    %cst_64 = arith.constant 0.000000e+00 : f32
    %203 = vector.broadcast %cst_64 : f32 to vector<4x512xf32>
    %cst_65 = arith.constant 0.000000e+00 : f32
    %204 = vector.broadcast %cst_65 : f32 to vector<4x512xf32>
    %205 = vector.extract_strided_slice %194 {offsets = [0, 0], sizes = [1, 512], strides = [1, 1]} : vector<4x512xf32> to vector<1x512xf32>
    %206 = vector.extract_strided_slice %200 {offsets = [0, 0], sizes = [4, 1], strides = [1, 1]} : vector<4x4xf32> to vector<4x1xf32>
    %207 = vector.broadcast %206 : vector<4x1xf32> to vector<4x512xf32>
    %208 = vector.broadcast %205 : vector<1x512xf32> to vector<4x512xf32>
    %209 = arith.mulf %207, %208 : vector<4x512xf32>
    %210 = arith.addf %203, %209 : vector<4x512xf32>
    %211 = vector.extract_strided_slice %202 {offsets = [0, 0], sizes = [4, 1], strides = [1, 1]} : vector<4x4xf32> to vector<4x1xf32>
    %212 = vector.broadcast %211 : vector<4x1xf32> to vector<4x512xf32>
    %213 = vector.broadcast %205 : vector<1x512xf32> to vector<4x512xf32>
    %214 = arith.mulf %212, %213 : vector<4x512xf32>
    %215 = arith.addf %204, %214 : vector<4x512xf32>
    %216 = vector.extract_strided_slice %194 {offsets = [1, 0], sizes = [1, 512], strides = [1, 1]} : vector<4x512xf32> to vector<1x512xf32>
    %217 = vector.extract_strided_slice %200 {offsets = [0, 1], sizes = [4, 1], strides = [1, 1]} : vector<4x4xf32> to vector<4x1xf32>
    %218 = vector.broadcast %217 : vector<4x1xf32> to vector<4x512xf32>
    %219 = vector.broadcast %216 : vector<1x512xf32> to vector<4x512xf32>
    %220 = arith.mulf %218, %219 : vector<4x512xf32>
    %221 = arith.addf %210, %220 : vector<4x512xf32>
    %222 = vector.extract_strided_slice %202 {offsets = [0, 1], sizes = [4, 1], strides = [1, 1]} : vector<4x4xf32> to vector<4x1xf32>
    %223 = vector.broadcast %222 : vector<4x1xf32> to vector<4x512xf32>
    %224 = vector.broadcast %216 : vector<1x512xf32> to vector<4x512xf32>
    %225 = arith.mulf %223, %224 : vector<4x512xf32>
    %226 = arith.addf %215, %225 : vector<4x512xf32>
    %227 = vector.extract_strided_slice %194 {offsets = [2, 0], sizes = [1, 512], strides = [1, 1]} : vector<4x512xf32> to vector<1x512xf32>
    %228 = vector.extract_strided_slice %200 {offsets = [0, 2], sizes = [4, 1], strides = [1, 1]} : vector<4x4xf32> to vector<4x1xf32>
    %229 = vector.broadcast %228 : vector<4x1xf32> to vector<4x512xf32>
    %230 = vector.broadcast %227 : vector<1x512xf32> to vector<4x512xf32>
    %231 = arith.mulf %229, %230 : vector<4x512xf32>
    %232 = arith.addf %221, %231 : vector<4x512xf32>
    %233 = vector.extract_strided_slice %202 {offsets = [0, 2], sizes = [4, 1], strides = [1, 1]} : vector<4x4xf32> to vector<4x1xf32>
    %234 = vector.broadcast %233 : vector<4x1xf32> to vector<4x512xf32>
    %235 = vector.broadcast %227 : vector<1x512xf32> to vector<4x512xf32>
    %236 = arith.mulf %234, %235 : vector<4x512xf32>
    %237 = arith.addf %226, %236 : vector<4x512xf32>
    %238 = vector.extract_strided_slice %194 {offsets = [3, 0], sizes = [1, 512], strides = [1, 1]} : vector<4x512xf32> to vector<1x512xf32>
    %239 = vector.extract_strided_slice %200 {offsets = [0, 3], sizes = [4, 1], strides = [1, 1]} : vector<4x4xf32> to vector<4x1xf32>
    %240 = vector.broadcast %239 : vector<4x1xf32> to vector<4x512xf32>
    %241 = vector.broadcast %238 : vector<1x512xf32> to vector<4x512xf32>
    %242 = arith.mulf %240, %241 : vector<4x512xf32>
    %243 = arith.addf %232, %242 : vector<4x512xf32>
    %244 = vector.extract_strided_slice %202 {offsets = [0, 3], sizes = [4, 1], strides = [1, 1]} : vector<4x4xf32> to vector<4x1xf32>
    %245 = vector.broadcast %244 : vector<4x1xf32> to vector<4x512xf32>
    %246 = vector.broadcast %238 : vector<1x512xf32> to vector<4x512xf32>
    %247 = arith.mulf %245, %246 : vector<4x512xf32>
    %248 = arith.addf %237, %247 : vector<4x512xf32>
    %249 = vector.broadcast %196 : vector<4x1xf32> to vector<4x512xf32>
    %250 = arith.addf %243, %249 : vector<4x512xf32>
    %251 = vector.broadcast %198 : vector<4x1xf32> to vector<4x512xf32>
    %252 = arith.addf %248, %251 : vector<4x512xf32>
    %253 = vector.shape_cast %18 : vector<1x512xi1> to vector<1x512xi1>
    %254 = vector.broadcast %253 : vector<1x512xi1> to vector<4x512xi1>
    %255 = arith.select %254, %250, %252 : vector<4x512xi1>, vector<4x512xf32>
    %256 = arith.negf %255 : vector<4x512xf32>
    %257 = math.exp %256 : vector<4x512xf32>
    %cst_66 = arith.constant 1.000000e+00 : f32
    %258 = vector.broadcast %cst_66 : f32 to vector<4x512xf32>
    %259 = arith.addf %258, %257 : vector<4x512xf32>
    %260 = arith.divf %258, %259 : vector<4x512xf32>
    %261 = arith.mulf %255, %260 : vector<4x512xf32>
    %c1_67 = arith.constant 1 : index
    %c0_68 = arith.constant 0 : index
    %c0_69 = arith.constant 0 : index
    %c0_70 = arith.constant 0 : index
    %262 = vector.load %arg5[%c1_67, %c0_68, %c0_69, %c0_70] : memref<2x2x4x1xf32, #tpu.memory_space<vmem>>, vector<1x1x4x1xf32>
    %263 = vector.shape_cast %262 : vector<1x1x4x1xf32> to vector<4x1xf32>
    %c1_71 = arith.constant 1 : index
    %c1_72 = arith.constant 1 : index
    %c0_73 = arith.constant 0 : index
    %c0_74 = arith.constant 0 : index
    %264 = vector.load %arg5[%c1_71, %c1_72, %c0_73, %c0_74] : memref<2x2x4x1xf32, #tpu.memory_space<vmem>>, vector<1x1x4x1xf32>
    %265 = vector.shape_cast %264 : vector<1x1x4x1xf32> to vector<4x1xf32>
    %c1_75 = arith.constant 1 : index
    %c0_76 = arith.constant 0 : index
    %c0_77 = arith.constant 0 : index
    %c0_78 = arith.constant 0 : index
    %266 = vector.load %arg4[%c1_75, %c0_76, %c0_77, %c0_78] : memref<2x2x4x4xf32, #tpu.memory_space<vmem>>, vector<1x1x4x4xf32>
    %267 = vector.shape_cast %266 : vector<1x1x4x4xf32> to vector<4x4xf32>
    %c1_79 = arith.constant 1 : index
    %c1_80 = arith.constant 1 : index
    %c0_81 = arith.constant 0 : index
    %c0_82 = arith.constant 0 : index
    %268 = vector.load %arg4[%c1_79, %c1_80, %c0_81, %c0_82] : memref<2x2x4x4xf32, #tpu.memory_space<vmem>>, vector<1x1x4x4xf32>
    %269 = vector.shape_cast %268 : vector<1x1x4x4xf32> to vector<4x4xf32>
    %cst_83 = arith.constant 0.000000e+00 : f32
    %270 = vector.broadcast %cst_83 : f32 to vector<4x512xf32>
    %cst_84 = arith.constant 0.000000e+00 : f32
    %271 = vector.broadcast %cst_84 : f32 to vector<4x512xf32>
    %272 = vector.extract_strided_slice %194 {offsets = [0, 0], sizes = [1, 512], strides = [1, 1]} : vector<4x512xf32> to vector<1x512xf32>
    %273 = vector.extract_strided_slice %267 {offsets = [0, 0], sizes = [4, 1], strides = [1, 1]} : vector<4x4xf32> to vector<4x1xf32>
    %274 = vector.broadcast %273 : vector<4x1xf32> to vector<4x512xf32>
    %275 = vector.broadcast %272 : vector<1x512xf32> to vector<4x512xf32>
    %276 = arith.mulf %274, %275 : vector<4x512xf32>
    %277 = arith.addf %270, %276 : vector<4x512xf32>
    %278 = vector.extract_strided_slice %269 {offsets = [0, 0], sizes = [4, 1], strides = [1, 1]} : vector<4x4xf32> to vector<4x1xf32>
    %279 = vector.broadcast %278 : vector<4x1xf32> to vector<4x512xf32>
    %280 = vector.broadcast %272 : vector<1x512xf32> to vector<4x512xf32>
    %281 = arith.mulf %279, %280 : vector<4x512xf32>
    %282 = arith.addf %271, %281 : vector<4x512xf32>
    %283 = vector.extract_strided_slice %194 {offsets = [1, 0], sizes = [1, 512], strides = [1, 1]} : vector<4x512xf32> to vector<1x512xf32>
    %284 = vector.extract_strided_slice %267 {offsets = [0, 1], sizes = [4, 1], strides = [1, 1]} : vector<4x4xf32> to vector<4x1xf32>
    %285 = vector.broadcast %284 : vector<4x1xf32> to vector<4x512xf32>
    %286 = vector.broadcast %283 : vector<1x512xf32> to vector<4x512xf32>
    %287 = arith.mulf %285, %286 : vector<4x512xf32>
    %288 = arith.addf %277, %287 : vector<4x512xf32>
    %289 = vector.extract_strided_slice %269 {offsets = [0, 1], sizes = [4, 1], strides = [1, 1]} : vector<4x4xf32> to vector<4x1xf32>
    %290 = vector.broadcast %289 : vector<4x1xf32> to vector<4x512xf32>
    %291 = vector.broadcast %283 : vector<1x512xf32> to vector<4x512xf32>
    %292 = arith.mulf %290, %291 : vector<4x512xf32>
    %293 = arith.addf %282, %292 : vector<4x512xf32>
    %294 = vector.extract_strided_slice %194 {offsets = [2, 0], sizes = [1, 512], strides = [1, 1]} : vector<4x512xf32> to vector<1x512xf32>
    %295 = vector.extract_strided_slice %267 {offsets = [0, 2], sizes = [4, 1], strides = [1, 1]} : vector<4x4xf32> to vector<4x1xf32>
    %296 = vector.broadcast %295 : vector<4x1xf32> to vector<4x512xf32>
    %297 = vector.broadcast %294 : vector<1x512xf32> to vector<4x512xf32>
    %298 = arith.mulf %296, %297 : vector<4x512xf32>
    %299 = arith.addf %288, %298 : vector<4x512xf32>
    %300 = vector.extract_strided_slice %269 {offsets = [0, 2], sizes = [4, 1], strides = [1, 1]} : vector<4x4xf32> to vector<4x1xf32>
    %301 = vector.broadcast %300 : vector<4x1xf32> to vector<4x512xf32>
    %302 = vector.broadcast %294 : vector<1x512xf32> to vector<4x512xf32>
    %303 = arith.mulf %301, %302 : vector<4x512xf32>
    %304 = arith.addf %293, %303 : vector<4x512xf32>
    %305 = vector.extract_strided_slice %194 {offsets = [3, 0], sizes = [1, 512], strides = [1, 1]} : vector<4x512xf32> to vector<1x512xf32>
    %306 = vector.extract_strided_slice %267 {offsets = [0, 3], sizes = [4, 1], strides = [1, 1]} : vector<4x4xf32> to vector<4x1xf32>
    %307 = vector.broadcast %306 : vector<4x1xf32> to vector<4x512xf32>
    %308 = vector.broadcast %305 : vector<1x512xf32> to vector<4x512xf32>
    %309 = arith.mulf %307, %308 : vector<4x512xf32>
    %310 = arith.addf %299, %309 : vector<4x512xf32>
    %311 = vector.extract_strided_slice %269 {offsets = [0, 3], sizes = [4, 1], strides = [1, 1]} : vector<4x4xf32> to vector<4x1xf32>
    %312 = vector.broadcast %311 : vector<4x1xf32> to vector<4x512xf32>
    %313 = vector.broadcast %305 : vector<1x512xf32> to vector<4x512xf32>
    %314 = arith.mulf %312, %313 : vector<4x512xf32>
    %315 = arith.addf %304, %314 : vector<4x512xf32>
    %316 = vector.broadcast %263 : vector<4x1xf32> to vector<4x512xf32>
    %317 = arith.addf %310, %316 : vector<4x512xf32>
    %318 = vector.broadcast %265 : vector<4x1xf32> to vector<4x512xf32>
    %319 = arith.addf %315, %318 : vector<4x512xf32>
    %320 = vector.shape_cast %18 : vector<1x512xi1> to vector<1x512xi1>
    %321 = vector.broadcast %320 : vector<1x512xi1> to vector<4x512xi1>
    %322 = arith.select %321, %317, %319 : vector<4x512xi1>, vector<4x512xf32>
    %323 = arith.negf %322 : vector<4x512xf32>
    %324 = math.exp %323 : vector<4x512xf32>
    %cst_85 = arith.constant 1.000000e+00 : f32
    %325 = vector.broadcast %cst_85 : f32 to vector<4x512xf32>
    %326 = arith.addf %325, %324 : vector<4x512xf32>
    %327 = arith.divf %325, %326 : vector<4x512xf32>
    %328 = arith.mulf %322, %327 : vector<4x512xf32>
    %329 = vector.extract_strided_slice %261 {offsets = [0, 0], sizes = [4, 32], strides = [1, 1]} : vector<4x512xf32> to vector<4x32xf32>
    %330 = vector.extract_strided_slice %328 {offsets = [0, 0], sizes = [4, 32], strides = [1, 1]} : vector<4x512xf32> to vector<4x32xf32>
    %331 = vector.extract_strided_slice %261 {offsets = [0, 32], sizes = [4, 32], strides = [1, 1]} : vector<4x512xf32> to vector<4x32xf32>
    %332 = vector.extract_strided_slice %328 {offsets = [0, 32], sizes = [4, 32], strides = [1, 1]} : vector<4x512xf32> to vector<4x32xf32>
    %333 = vector.extract_strided_slice %261 {offsets = [0, 64], sizes = [4, 32], strides = [1, 1]} : vector<4x512xf32> to vector<4x32xf32>
    %334 = vector.extract_strided_slice %328 {offsets = [0, 64], sizes = [4, 32], strides = [1, 1]} : vector<4x512xf32> to vector<4x32xf32>
    %335 = vector.extract_strided_slice %261 {offsets = [0, 96], sizes = [4, 32], strides = [1, 1]} : vector<4x512xf32> to vector<4x32xf32>
    %336 = vector.extract_strided_slice %328 {offsets = [0, 96], sizes = [4, 32], strides = [1, 1]} : vector<4x512xf32> to vector<4x32xf32>
    %337 = vector.extract_strided_slice %261 {offsets = [0, 128], sizes = [4, 32], strides = [1, 1]} : vector<4x512xf32> to vector<4x32xf32>
    %338 = vector.extract_strided_slice %328 {offsets = [0, 128], sizes = [4, 32], strides = [1, 1]} : vector<4x512xf32> to vector<4x32xf32>
    %339 = vector.extract_strided_slice %261 {offsets = [0, 160], sizes = [4, 32], strides = [1, 1]} : vector<4x512xf32> to vector<4x32xf32>
    %340 = vector.extract_strided_slice %328 {offsets = [0, 160], sizes = [4, 32], strides = [1, 1]} : vector<4x512xf32> to vector<4x32xf32>
    %341 = vector.extract_strided_slice %261 {offsets = [0, 192], sizes = [4, 32], strides = [1, 1]} : vector<4x512xf32> to vector<4x32xf32>
    %342 = vector.extract_strided_slice %328 {offsets = [0, 192], sizes = [4, 32], strides = [1, 1]} : vector<4x512xf32> to vector<4x32xf32>
    %343 = vector.extract_strided_slice %261 {offsets = [0, 224], sizes = [4, 32], strides = [1, 1]} : vector<4x512xf32> to vector<4x32xf32>
    %344 = vector.extract_strided_slice %328 {offsets = [0, 224], sizes = [4, 32], strides = [1, 1]} : vector<4x512xf32> to vector<4x32xf32>
    %345 = vector.extract_strided_slice %261 {offsets = [0, 256], sizes = [4, 32], strides = [1, 1]} : vector<4x512xf32> to vector<4x32xf32>
    %346 = vector.extract_strided_slice %328 {offsets = [0, 256], sizes = [4, 32], strides = [1, 1]} : vector<4x512xf32> to vector<4x32xf32>
    %347 = vector.extract_strided_slice %261 {offsets = [0, 288], sizes = [4, 32], strides = [1, 1]} : vector<4x512xf32> to vector<4x32xf32>
    %348 = vector.extract_strided_slice %328 {offsets = [0, 288], sizes = [4, 32], strides = [1, 1]} : vector<4x512xf32> to vector<4x32xf32>
    %349 = vector.extract_strided_slice %261 {offsets = [0, 320], sizes = [4, 32], strides = [1, 1]} : vector<4x512xf32> to vector<4x32xf32>
    %350 = vector.extract_strided_slice %328 {offsets = [0, 320], sizes = [4, 32], strides = [1, 1]} : vector<4x512xf32> to vector<4x32xf32>
    %351 = vector.extract_strided_slice %261 {offsets = [0, 352], sizes = [4, 32], strides = [1, 1]} : vector<4x512xf32> to vector<4x32xf32>
    %352 = vector.extract_strided_slice %328 {offsets = [0, 352], sizes = [4, 32], strides = [1, 1]} : vector<4x512xf32> to vector<4x32xf32>
    %353 = vector.extract_strided_slice %261 {offsets = [0, 384], sizes = [4, 32], strides = [1, 1]} : vector<4x512xf32> to vector<4x32xf32>
    %354 = vector.extract_strided_slice %328 {offsets = [0, 384], sizes = [4, 32], strides = [1, 1]} : vector<4x512xf32> to vector<4x32xf32>
    %355 = vector.extract_strided_slice %261 {offsets = [0, 416], sizes = [4, 32], strides = [1, 1]} : vector<4x512xf32> to vector<4x32xf32>
    %356 = vector.extract_strided_slice %328 {offsets = [0, 416], sizes = [4, 32], strides = [1, 1]} : vector<4x512xf32> to vector<4x32xf32>
    %357 = vector.extract_strided_slice %261 {offsets = [0, 448], sizes = [4, 32], strides = [1, 1]} : vector<4x512xf32> to vector<4x32xf32>
    %358 = vector.extract_strided_slice %328 {offsets = [0, 448], sizes = [4, 32], strides = [1, 1]} : vector<4x512xf32> to vector<4x32xf32>
    %359 = vector.extract_strided_slice %261 {offsets = [0, 480], sizes = [4, 32], strides = [1, 1]} : vector<4x512xf32> to vector<4x32xf32>
    %360 = vector.extract_strided_slice %328 {offsets = [0, 480], sizes = [4, 32], strides = [1, 1]} : vector<4x512xf32> to vector<4x32xf32>
    %361 = tpu.concatenate %329, %330, %331, %332, %333, %334, %335, %336, %337, %338, %339, %340, %341, %342, %343, %344 in 1 : vector<4x32xf32>, vector<4x32xf32>, vector<4x32xf32>, vector<4x32xf32>, vector<4x32xf32>, vector<4x32xf32>, vector<4x32xf32>, vector<4x32xf32>, vector<4x32xf32>, vector<4x32xf32>, vector<4x32xf32>, vector<4x32xf32>, vector<4x32xf32>, vector<4x32xf32>, vector<4x32xf32>, vector<4x32xf32> -> vector<4x512xf32>
    %362 = tpu.concatenate %345, %346, %347, %348, %349, %350, %351, %352, %353, %354, %355, %356, %357, %358, %359, %360 in 1 : vector<4x32xf32>, vector<4x32xf32>, vector<4x32xf32>, vector<4x32xf32>, vector<4x32xf32>, vector<4x32xf32>, vector<4x32xf32>, vector<4x32xf32>, vector<4x32xf32>, vector<4x32xf32>, vector<4x32xf32>, vector<4x32xf32>, vector<4x32xf32>, vector<4x32xf32>, vector<4x32xf32>, vector<4x32xf32> -> vector<4x512xf32>
    %363 = tpu.concatenate %361, %362 in 1 : vector<4x512xf32>, vector<4x512xf32> -> vector<4x1024xf32>
    %c1_86 = arith.constant 1 : index
    %c0_87 = arith.constant 0 : index
    %c0_88 = arith.constant 0 : index
    %364 = vector.load %arg6[%c1_86, %c0_87, %c0_88] : memref<2x4x1024xf32, #tpu.memory_space<vmem>>, vector<1x4x1024xf32>
    %365 = vector.shape_cast %364 : vector<1x4x1024xf32> to vector<4x1024xf32>
    %366 = vector.shape_cast %363 : vector<4x1024xf32> to vector<1x4x1024xf32>
    tpu.vector_store %arg6[%c1_86, %c0_87, %c0_88], %366 {strides = array<i32>} : memref<2x4x1024xf32, #tpu.memory_space<vmem>>, vector<1x4x1024xf32>,
    return
  }
  func.func @transform_0(%arg0: i32, %arg1: i32, %arg2: i32) -> (i32, i32, i32) {
    %c0_i32 = arith.constant 0 : i32
    %c0_i32_0 = arith.constant 0 : i32
    return %arg0, %c0_i32, %arg2 : i32, i32, i32
  }
  func.func @transform_1(%arg0: i32, %arg1: i32, %arg2: i32) -> (i32, i32, i32, i32) {
    %c0_i32 = arith.constant 0 : i32
    %c0_i32_0 = arith.constant 0 : i32
    %c0_i32_1 = arith.constant 0 : i32
    %c0_i32_2 = arith.constant 0 : i32
    return %c0_i32, %c0_i32_0, %arg1, %c0_i32_1 : i32, i32, i32, i32
  }
  func.func @transform_2(%arg0: i32, %arg1: i32, %arg2: i32) -> (i32, i32, i32, i32) {
    %c0_i32 = arith.constant 0 : i32
    %c0_i32_0 = arith.constant 0 : i32
    %c0_i32_1 = arith.constant 0 : i32
    %c0_i32_2 = arith.constant 0 : i32
    return %c0_i32, %c0_i32_0, %arg1, %c0_i32_1 : i32, i32, i32, i32
  }
  func.func @transform_3(%arg0: i32, %arg1: i32, %arg2: i32) -> (i32, i32, i32) {
    %c0_i32 = arith.constant 0 : i32
    return %arg0, %arg1, %arg2 : i32, i32, i32
  }
}

</mosaic_0001>

<llo_original>
// kernel: pixel_shuffle_upsample.1
$region0: #{pixel_shuffle_upsample.1}
  #allocation0 [shape = 'u32[]', space=smem, size = 0x4, offset = 0x4, fixed_abs, tag = 'smem constant byte address 0x4 - core index']
  #allocation1 [shape = 'u32[144,128]{1,0:T(1,128)}', space=vmem, size = 0x12000, scoped, tag = 'internal scratch']
  %s0 = inlined_call_operand.vmem [shape: f32[2,4,512], index: 0, kind: input, shape index: {}]
  %s1 = inlined_call_operand.vmem [shape: f32[2,2,4,4], index: 1, kind: input, shape index: {}]
  %s2 = inlined_call_operand.vmem [shape: f32[2,2,4,1], index: 2, kind: input, shape index: {}]
  %s3 = inlined_call_operand.vmem [shape: f32[2,4,1024], index: 3, kind: output, shape index: {}]
  %s4 = sld [smem:[#allocation0]]
  $region22: #{pixel_shuffle_upsample.1} parent=0
    _
  %s6 = ssub.s32 1, %s4
  %s7 = scalar_select 0, %s6, %s4
  // Predicated region
  $region2: #{pixel_shuffle_upsample.1} parent=0 // pred_check
    _
  $region3: #{pixel_shuffle_upsample.1} parent=0 // pred_check_branch
    %9 = sbr.rel (0) target = $region5
  $region4: #{pixel_shuffle_upsample.1} parent=0 // pred_region
    _
  $region5: #{pixel_shuffle_upsample.1} parent=0 // pred_fallthru
    _
  // Predicated region
  $region6: #{pixel_shuffle_upsample.1} parent=0 // pred_check
    _
  $region7: #{pixel_shuffle_upsample.1} parent=0 // pred_check_branch
    %11 = sbr.rel (0) target = $region9
  $region8: #{pixel_shuffle_upsample.1} parent=0 // pred_region
    _
  $region9: #{pixel_shuffle_upsample.1} parent=0 // pred_fallthru
    _
  // Predicated region
  $region10: #{pixel_shuffle_upsample.1} parent=0 // pred_check
    _
  $region11: #{pixel_shuffle_upsample.1} parent=0 // pred_check_branch
    %13 = sbr.rel (0) target = $region13
  $region12: #{pixel_shuffle_upsample.1} parent=0 // pred_region
    _
  $region13: #{pixel_shuffle_upsample.1} parent=0 // pred_fallthru
    _
  %v14 = vlaneseq
  %v15 = vand.u32 %v14, 127
  %v16 = vadd.s32 %v15, 128
  %v17 = vadd.s32 %v15, 256
  %v18 = vadd.s32 %v15, 384
  %vm19 = vcmp.lt.s32.totalorder %v15, 0
  %v20 = vsub.s32 0, %v15
  %v21 = vsel %vm19, %v20, %v15
  %v22 = vshrl.u32 %v21, 1
  %v23 = vand.u32 %v21, 1
  %v24 = vsub.s32 0, %v23
  %v25 = vsel %vm19, %v24, %v23
  %vm26 = vcmp.lt.s32.totalorder %v16, 0
  %v27 = vsub.s32 0, %v16
  %v28 = vsel %vm26, %v27, %v16
  %v29 = vshrl.u32 %v28, 1
  %v30 = vand.u32 %v28, 1
  %v31 = vsub.s32 0, %v30
  %v32 = vsel %vm26, %v31, %v30
  %vm33 = vcmp.lt.s32.totalorder %v17, 0
  %v34 = vsub.s32 0, %v17
  %v35 = vsel %vm33, %v34, %v17
  %v36 = vshrl.u32 %v35, 1
  %v37 = vand.u32 %v35, 1
  %v38 = vsub.s32 0, %v37
  %v39 = vsel %vm33, %v38, %v37
  %vm40 = vcmp.lt.s32.totalorder %v18, 0
  %v41 = vsub.s32 0, %v18
  %v42 = vsel %vm40, %v41, %v18
  %v43 = vshrl.u32 %v42, 1
  %v44 = vand.u32 %v42, 1
  %v45 = vsub.s32 0, %v44
  %v46 = vsel %vm40, %v45, %v44
  %vm47 = vcmp.ne.s32.totalorder %v25, 0
  %vm48 = vcmp.ne.s32.totalorder %v32, 0
  %vm49 = vcmp.ne.s32.totalorder %v39, 0
  %vm50 = vcmp.ne.s32.totalorder %v46, 0
  %vm51 = vcmp.lt.s32.totalorder %v25, 0
  %vm52 = vcmp.lt.s32.totalorder %v32, 0
  %vm53 = vcmp.lt.s32.totalorder %v39, 0
  %vm54 = vcmp.lt.s32.totalorder %v46, 0
  %vm55 = vmand %vm51, %vm47
  %vm56 = vmand %vm52, %vm48
  %vm57 = vmand %vm53, %vm49
  %vm58 = vmand %vm54, %vm50
  %v59 = vadd.s32 %v25, 2
  %v60 = vadd.s32 %v32, 2
  %v61 = vadd.s32 %v39, 2
  %v62 = vadd.s32 %v46, 2
  %v63 = vsel %vm55, %v59, %v25
  %v64 = vsel %vm56, %v60, %v32
  %v65 = vsel %vm57, %v61, %v39
  %v66 = vsel %vm58, %v62, %v46
  %vm67 = vcmp.eq.s32.totalorder %v63, 0
  %vm68 = vcmp.eq.s32.totalorder %v64, 0
  %vm69 = vcmp.eq.s32.totalorder %v65, 0
  %vm70 = vcmp.eq.s32.totalorder %v66, 0
  %v71 = vld [vmem:[%s0] sm:$0xff]
  %v72 = vld [vmem:[%s0 + $0x8] sm:$0xff]
  %v73 = vld [vmem:[%s2] sm:$0xf]
  %s74 = scalar_lea.vmem %s2, 4
  %v75 = vld [vmem:[%s74] sm:$0xf]
  %v76 = vld [vmem:[%s1] sm:$0xf]
  %s77 = scalar_lea.vmem %s1, 4
  %v78 = vld [vmem:[%s77] sm:$0xf]
  %80 = vset.pattern.permute.xlu0 0
  %81 = vperm.xlu0 %80, %v76
  %v82 = vpop.permute.xlu0 %81
  %v86 = vlaneseq
  %v87 = vshrl.u32 %v86, 7
  %v88 = vsub.s32 0, %v87
  %v89 = vrot.slane %v71, %v88
  %v90 = vlaneseq
  %v91 = vshrl.u32 %v90, 7
  %v92 = vsub.s32 4, %v91
  %v93 = vrot.slane %v71, %v92
  %v94 = vlaneseq
  %v95 = vshrl.u32 %v94, 7
  %v96 = vsub.s32 0, %v95
  %v97 = vrot.slane %v72, %v96
  %v98 = vlaneseq
  %v99 = vshrl.u32 %v98, 7
  %v100 = vsub.s32 4, %v99
  %v101 = vrot.slane %v72, %v100
  %v106 = vlaneseq
  %v107 = vshrl.u32 %v106, 7
  %v108 = vsub.s32 0, %v107
  %v109 = vrot.slane %v89, %v108
  %v110 = vlaneseq
  %v111 = vshrl.u32 %v110, 7
  %v112 = vsub.s32 0, %v111
  %v113 = vrot.slane %v93, %v112
  %v114 = vlaneseq
  %v115 = vshrl.u32 %v114, 7
  %v116 = vsub.s32 0, %v115
  %v117 = vrot.slane %v97, %v116
  %v118 = vlaneseq
  %v119 = vshrl.u32 %v118, 7
  %v120 = vsub.s32 0, %v119
  %v121 = vrot.slane %v101, %v120
  %v122 = vmul.f32 %v82, %v109
  %v123 = vmul.f32 %v82, %v113
  %v124 = vmul.f32 %v82, %v117
  %v125 = vmul.f32 %v82, %v121
  %v126 = vadd.f32 %v122, 0.0
  %v127 = vadd.f32 %v123, 0.0
  %v128 = vadd.f32 %v124, 0.0
  %v129 = vadd.f32 %v125, 0.0
  %131 = vset.pattern.permute.xlu0 0
  %132 = vperm.xlu0 %131, %v78
  %v133 = vpop.permute.xlu0 %132
  %v135 = vmul.f32 %v133, %v109
  %v136 = vmul.f32 %v133, %v113
  %v137 = vmul.f32 %v133, %v117
  %v138 = vmul.f32 %v133, %v121
  %v139 = vadd.f32 %v135, 0.0
  %v140 = vadd.f32 %v136, 0.0
  %v141 = vadd.f32 %v137, 0.0
  %v142 = vadd.f32 %v138, 0.0
  %143 = vset.pattern.permute.xlu0 1
  %144 = vperm.xlu0 %143, %v76
  %v145 = vpop.permute.xlu0 %144
  %v147 = vlaneseq
  %v148 = vshrl.u32 %v147, 7
  %v149 = vsub.s32 1, %v148
  %v150 = vrot.slane %v71, %v149
  %v151 = vlaneseq
  %v152 = vshrl.u32 %v151, 7
  %v153 = vsub.s32 5, %v152
  %v154 = vrot.slane %v71, %v153
  %v155 = vlaneseq
  %v156 = vshrl.u32 %v155, 7
  %v157 = vsub.s32 1, %v156
  %v158 = vrot.slane %v72, %v157
  %v159 = vlaneseq
  %v160 = vshrl.u32 %v159, 7
  %v161 = vsub.s32 5, %v160
  %v162 = vrot.slane %v72, %v161
  %v167 = vlaneseq
  %v168 = vshrl.u32 %v167, 7
  %v169 = vsub.s32 1, %v168
  %v170 = vrot.slane %v150, %v169
  %v171 = vlaneseq
  %v172 = vshrl.u32 %v171, 7
  %v173 = vsub.s32 1, %v172
  %v174 = vrot.slane %v154, %v173
  %v175 = vlaneseq
  %v176 = vshrl.u32 %v175, 7
  %v177 = vsub.s32 1, %v176
  %v178 = vrot.slane %v158, %v177
  %v179 = vlaneseq
  %v180 = vshrl.u32 %v179, 7
  %v181 = vsub.s32 1, %v180
  %v182 = vrot.slane %v162, %v181
  %v183 = vmul.f32 %v145, %v170
  %v184 = vmul.f32 %v145, %v174
  %v185 = vmul.f32 %v145, %v178
  %v186 = vmul.f32 %v145, %v182
  %v187 = vadd.f32 %v126, %v183
  %v188 = vadd.f32 %v127, %v184
  %v189 = vadd.f32 %v128, %v185
  %v190 = vadd.f32 %v129, %v186
  %191 = vset.pattern.permute.xlu0 1
  %192 = vperm.xlu0 %191, %v78
  %v193 = vpop.permute.xlu0 %192
  %v195 = vmul.f32 %v193, %v170
  %v196 = vmul.f32 %v193, %v174
  %v197 = vmul.f32 %v193, %v178
  %v198 = vmul.f32 %v193, %v182
  %v199 = vadd.f32 %v139, %v195
  %v200 = vadd.f32 %v140, %v196
  %v201 = vadd.f32 %v141, %v197
  %v202 = vadd.f32 %v142, %v198
  %203 = vset.pattern.permute.xlu0 2
  %204 = vperm.xlu0 %203, %v76
  %v205 = vpop.permute.xlu0 %204
  %v207 = vlaneseq
  %v208 = vshrl.u32 %v207, 7
  %v209 = vsub.s32 2, %v208
  %v210 = vrot.slane %v71, %v209
  %v211 = vlaneseq
  %v212 = vshrl.u32 %v211, 7
  %v213 = vsub.s32 6, %v212
  %v214 = vrot.slane %v71, %v213
  %v215 = vlaneseq
  %v216 = vshrl.u32 %v215, 7
  %v217 = vsub.s32 2, %v216
  %v218 = vrot.slane %v72, %v217
  %v219 = vlaneseq
  %v220 = vshrl.u32 %v219, 7
  %v221 = vsub.s32 6, %v220
  %v222 = vrot.slane %v72, %v221
  %v227 = vlaneseq
  %v228 = vshrl.u32 %v227, 7
  %v229 = vsub.s32 2, %v228
  %v230 = vrot.slane %v210, %v229
  %v231 = vlaneseq
  %v232 = vshrl.u32 %v231, 7
  %v233 = vsub.s32 2, %v232
  %v234 = vrot.slane %v214, %v233
  %v235 = vlaneseq
  %v236 = vshrl.u32 %v235, 7
  %v237 = vsub.s32 2, %v236
  %v238 = vrot.slane %v218, %v237
  %v239 = vlaneseq
  %v240 = vshrl.u32 %v239, 7
  %v241 = vsub.s32 2, %v240
  %v242 = vrot.slane %v222, %v241
  %v243 = vmul.f32 %v205, %v230
  %v244 = vmul.f32 %v205, %v234
  %v245 = vmul.f32 %v205, %v238
  %v246 = vmul.f32 %v205, %v242
  %v247 = vadd.f32 %v187, %v243
  %v248 = vadd.f32 %v188, %v244
  %v249 = vadd.f32 %v189, %v245
  %v250 = vadd.f32 %v190, %v246
  %251 = vset.pattern.permute.xlu0 2
  %252 = vperm.xlu0 %251, %v78
  %v253 = vpop.permute.xlu0 %252
  %v255 = vmul.f32 %v253, %v230
  %v256 = vmul.f32 %v253, %v234
  %v257 = vmul.f32 %v253, %v238
  %v258 = vmul.f32 %v253, %v242
  %v259 = vadd.f32 %v199, %v255
  %v260 = vadd.f32 %v200, %v256
  %v261 = vadd.f32 %v201, %v257
  %v262 = vadd.f32 %v202, %v258
  %263 = vset.pattern.permute.xlu0 3
  %264 = vperm.xlu0 %263, %v76
  %v265 = vpop.permute.xlu0 %264
  %v267 = vlaneseq
  %v268 = vshrl.u32 %v267, 7
  %v269 = vsub.s32 3, %v268
  %v270 = vrot.slane %v71, %v269
  %v271 = vlaneseq
  %v272 = vshrl.u32 %v271, 7
  %v273 = vsub.s32 7, %v272
  %v274 = vrot.slane %v71, %v273
  %v275 = vlaneseq
  %v276 = vshrl.u32 %v275, 7
  %v277 = vsub.s32 3, %v276
  %v278 = vrot.slane %v72, %v277
  %v279 = vlaneseq
  %v280 = vshrl.u32 %v279, 7
  %v281 = vsub.s32 7, %v280
  %v282 = vrot.slane %v72, %v281
  %v287 = vlaneseq
  %v288 = vshrl.u32 %v287, 7
  %v289 = vsub.s32 3, %v288
  %v290 = vrot.slane %v270, %v289
  %v291 = vlaneseq
  %v292 = vshrl.u32 %v291, 7
  %v293 = vsub.s32 3, %v292
  %v294 = vrot.slane %v274, %v293
  %v295 = vlaneseq
  %v296 = vshrl.u32 %v295, 7
  %v297 = vsub.s32 3, %v296
  %v298 = vrot.slane %v278, %v297
  %v299 = vlaneseq
  %v300 = vshrl.u32 %v299, 7
  %v301 = vsub.s32 3, %v300
  %v302 = vrot.slane %v282, %v301
  %v303 = vmul.f32 %v265, %v290
  %v304 = vmul.f32 %v265, %v294
  %v305 = vmul.f32 %v265, %v298
  %v306 = vmul.f32 %v265, %v302
  %v307 = vadd.f32 %v247, %v303
  %v308 = vadd.f32 %v248, %v304
  %v309 = vadd.f32 %v249, %v305
  %v310 = vadd.f32 %v250, %v306
  %311 = vset.pattern.permute.xlu0 3
  %312 = vperm.xlu0 %311, %v78
  %v313 = vpop.permute.xlu0 %312
  %v315 = vmul.f32 %v313, %v290
  %v316 = vmul.f32 %v313, %v294
  %v317 = vmul.f32 %v313, %v298
  %v318 = vmul.f32 %v313, %v302
  %v319 = vadd.f32 %v259, %v315
  %v320 = vadd.f32 %v260, %v316
  %v321 = vadd.f32 %v261, %v317
  %v322 = vadd.f32 %v262, %v318
  %324 = vset.pattern.permute.xlu0 0
  %325 = vperm.xlu0 %324, %v73
  %v326 = vpop.permute.xlu0 %325
  %v328 = vadd.f32 %v307, %v326
  %v329 = vadd.f32 %v308, %v326
  %v330 = vadd.f32 %v309, %v326
  %v331 = vadd.f32 %v310, %v326
  %333 = vset.pattern.permute.xlu0 0
  %334 = vperm.xlu0 %333, %v75
  %v335 = vpop.permute.xlu0 %334
  %v337 = vadd.f32 %v319, %v335
  %v338 = vadd.f32 %v320, %v335
  %v339 = vadd.f32 %v321, %v335
  %v340 = vadd.f32 %v322, %v335
  %v341 = vsel %vm67, 1, 0
  %v342 = vsel %vm68, 1, 0
  %v343 = vsel %vm69, 1, 0
  %v344 = vsel %vm70, 1, 0
  %vm345 = vcmp.eq.s32.totalorder %v341, 1
  %vm346 = vcmp.eq.s32.totalorder %v342, 1
  %vm347 = vcmp.eq.s32.totalorder %v343, 1
  %vm348 = vcmp.eq.s32.totalorder %v344, 1
  %v349 = vsel %vm345, %v328, %v337
  %v350 = vsel %vm346, %v329, %v338
  %v351 = vsel %vm347, %v330, %v339
  %v352 = vsel %vm348, %v331, %v340
  %v353 = vxor.u32 %v349, 2147483648
  %v354 = vxor.u32 %v350, 2147483648
  %v355 = vxor.u32 %v351, 2147483648
  %v356 = vxor.u32 %v352, 2147483648
  %v357 = vmul.f32 %v353, 1.442695
  %v358 = vpow.pop %v357
  %v359 = vmul.f32 %v354, 1.442695
  %v360 = vpow.pop %v359
  %v361 = vmul.f32 %v355, 1.442695
  %v362 = vpow.pop %v361
  %v363 = vmul.f32 %v356, 1.442695
  %v364 = vpow.pop %v363
  %v365 = vadd.f32 %v358, 1.0
  %v366 = vadd.f32 %v360, 1.0
  %v367 = vadd.f32 %v362, 1.0
  %v368 = vadd.f32 %v364, 1.0
  %v369 = vrcp.pop %v365
  %v370 = vmul.f32 1.0, %v369
  %v371 = vrcp.pop %v366
  %v372 = vmul.f32 1.0, %v371
  %v373 = vrcp.pop %v367
  %v374 = vmul.f32 1.0, %v373
  %v375 = vrcp.pop %v368
  %v376 = vmul.f32 1.0, %v375
  %v377 = vmul.f32 %v349, %v370
  %v378 = vmul.f32 %v350, %v372
  %v379 = vmul.f32 %v351, %v374
  %v380 = vmul.f32 %v352, %v376
  %s381 = scalar_lea.vmem %s2, 8
  %v382 = vld [vmem:[%s381] sm:$0xf]
  %s383 = scalar_lea.vmem %s2, 12
  %v384 = vld [vmem:[%s383] sm:$0xf]
  %s385 = scalar_lea.vmem %s1, 8
  %v386 = vld [vmem:[%s385] sm:$0xf]
  %s387 = scalar_lea.vmem %s1, 12
  %v388 = vld [vmem:[%s387] sm:$0xf]
  %390 = vset.pattern.permute.xlu0 0
  %391 = vperm.xlu0 %390, %v386
  %v392 = vpop.permute.xlu0 %391
  %v394 = vmul.f32 %v392, %v109
  %v395 = vmul.f32 %v392, %v113
  %v396 = vmul.f32 %v392, %v117
  %v397 = vmul.f32 %v392, %v121
  %v398 = vadd.f32 %v394, 0.0
  %v399 = vadd.f32 %v395, 0.0
  %v400 = vadd.f32 %v396, 0.0
  %v401 = vadd.f32 %v397, 0.0
  %403 = vset.pattern.permute.xlu0 0
  %404 = vperm.xlu0 %403, %v388
  %v405 = vpop.permute.xlu0 %404
  %v407 = vmul.f32 %v405, %v109
  %v408 = vmul.f32 %v405, %v113
  %v409 = vmul.f32 %v405, %v117
  %v410 = vmul.f32 %v405, %v121
  %v411 = vadd.f32 %v407, 0.0
  %v412 = vadd.f32 %v408, 0.0
  %v413 = vadd.f32 %v409, 0.0
  %v414 = vadd.f32 %v410, 0.0
  %415 = vset.pattern.permute.xlu0 1
  %416 = vperm.xlu0 %415, %v386
  %v417 = vpop.permute.xlu0 %416
  %v419 = vmul.f32 %v417, %v170
  %v420 = vmul.f32 %v417, %v174
  %v421 = vmul.f32 %v417, %v178
  %v422 = vmul.f32 %v417, %v182
  %v423 = vadd.f32 %v398, %v419
  %v424 = vadd.f32 %v399, %v420
  %v425 = vadd.f32 %v400, %v421
  %v426 = vadd.f32 %v401, %v422
  %427 = vset.pattern.permute.xlu0 1
  %428 = vperm.xlu0 %427, %v388
  %v429 = vpop.permute.xlu0 %428
  %v431 = vmul.f32 %v429, %v170
  %v432 = vmul.f32 %v429, %v174
  %v433 = vmul.f32 %v429, %v178
  %v434 = vmul.f32 %v429, %v182
  %v435 = vadd.f32 %v411, %v431
  %v436 = vadd.f32 %v412, %v432
  %v437 = vadd.f32 %v413, %v433
  %v438 = vadd.f32 %v414, %v434
  %439 = vset.pattern.permute.xlu0 2
  %440 = vperm.xlu0 %439, %v386
  %v441 = vpop.permute.xlu0 %440
  %v443 = vmul.f32 %v441, %v230
  %v444 = vmul.f32 %v441, %v234
  %v445 = vmul.f32 %v441, %v238
  %v446 = vmul.f32 %v441, %v242
  %v447 = vadd.f32 %v423, %v443
  %v448 = vadd.f32 %v424, %v444
  %v449 = vadd.f32 %v425, %v445
  %v450 = vadd.f32 %v426, %v446
  %451 = vset.pattern.permute.xlu0 2
  %452 = vperm.xlu0 %451, %v388
  %v453 = vpop.permute.xlu0 %452
  %v455 = vmul.f32 %v453, %v230
  %v456 = vmul.f32 %v453, %v234
  %v457 = vmul.f32 %v453, %v238
  %v458 = vmul.f32 %v453, %v242
  %v459 = vadd.f32 %v435, %v455
  %v460 = vadd.f32 %v436, %v456
  %v461 = vadd.f32 %v437, %v457
  %v462 = vadd.f32 %v438, %v458
  %463 = vset.pattern.permute.xlu0 3
  %464 = vperm.xlu0 %463, %v386
  %v465 = vpop.permute.xlu0 %464
  %v467 = vmul.f32 %v465, %v290
  %v468 = vmul.f32 %v465, %v294
  %v469 = vmul.f32 %v465, %v298
  %v470 = vmul.f32 %v465, %v302
  %v471 = vadd.f32 %v447, %v467
  %v472 = vadd.f32 %v448, %v468
  %v473 = vadd.f32 %v449, %v469
  %v474 = vadd.f32 %v450, %v470
  %475 = vset.pattern.permute.xlu0 3
  %476 = vperm.xlu0 %475, %v388
  %v477 = vpop.permute.xlu0 %476
  %v479 = vmul.f32 %v477, %v290
  %v480 = vmul.f32 %v477, %v294
  %v481 = vmul.f32 %v477, %v298
  %v482 = vmul.f32 %v477, %v302
  %v483 = vadd.f32 %v459, %v479
  %v484 = vadd.f32 %v460, %v480
  %v485 = vadd.f32 %v461, %v481
  %v486 = vadd.f32 %v462, %v482
  %488 = vset.pattern.permute.xlu0 0
  %489 = vperm.xlu0 %488, %v382
  %v490 = vpop.permute.xlu0 %489
  %v492 = vadd.f32 %v471, %v490
  %v493 = vadd.f32 %v472, %v490
  %v494 = vadd.f32 %v473, %v490
  %v495 = vadd.f32 %v474, %v490
  %497 = vset.pattern.permute.xlu0 0
  %498 = vperm.xlu0 %497, %v384
  %v499 = vpop.permute.xlu0 %498
  %v501 = vadd.f32 %v483, %v499
  %v502 = vadd.f32 %v484, %v499
  %v503 = vadd.f32 %v485, %v499
  %v504 = vadd.f32 %v486, %v499
  %v505 = vsel %vm345, %v492, %v501
  %v506 = vsel %vm346, %v493, %v502
  %v507 = vsel %vm347, %v494, %v503
  %v508 = vsel %vm348, %v495, %v504
  %v509 = vxor.u32 %v505, 2147483648
  %v510 = vxor.u32 %v506, 2147483648
  %v511 = vxor.u32 %v507, 2147483648
  %v512 = vxor.u32 %v508, 2147483648
  %v513 = vmul.f32 %v509, 1.442695
  %v514 = vpow.pop %v513
  %v515 = vmul.f32 %v510, 1.442695
  %v516 = vpow.pop %v515
  %v517 = vmul.f32 %v511, 1.442695
  %v518 = vpow.pop %v517
  %v519 = vmul.f32 %v512, 1.442695
  %v520 = vpow.pop %v519
  %v521 = vadd.f32 %v514, 1.0
  %v522 = vadd.f32 %v516, 1.0
  %v523 = vadd.f32 %v518, 1.0
  %v524 = vadd.f32 %v520, 1.0
  %v525 = vrcp.pop %v521
  %v526 = vmul.f32 1.0, %v525
  %v527 = vrcp.pop %v522
  %v528 = vmul.f32 1.0, %v527
  %v529 = vrcp.pop %v523
  %v530 = vmul.f32 1.0, %v529
  %v531 = vrcp.pop %v524
  %v532 = vmul.f32 1.0, %v531
  %v533 = vmul.f32 %v505, %v526
  %v534 = vmul.f32 %v506, %v528
  %v535 = vmul.f32 %v507, %v530
  %v536 = vmul.f32 %v508, %v532
  %538 = vrot.lane.b32.xlu0 %v533, 32
  %v539 = vpop.permute.xlu0 %538
  %542 = vrot.lane.b32.xlu0 %v377, 32
  %v543 = vpop.permute.xlu0 %542
  %545 = vrot.lane.b32.xlu0 %v533, 64
  %v546 = vpop.permute.xlu0 %545
  %548 = vrot.lane.b32.xlu0 %v377, 64
  %v549 = vpop.permute.xlu0 %548
  %551 = vrot.lane.b32.xlu0 %v533, 96
  %v552 = vpop.permute.xlu0 %551
  %554 = vrot.lane.b32.xlu0 %v377, 96
  %v555 = vpop.permute.xlu0 %554
  %558 = vrot.lane.b32.xlu0 %v534, 32
  %v559 = vpop.permute.xlu0 %558
  %562 = vrot.lane.b32.xlu0 %v378, 32
  %v563 = vpop.permute.xlu0 %562
  %565 = vrot.lane.b32.xlu0 %v534, 64
  %v566 = vpop.permute.xlu0 %565
  %568 = vrot.lane.b32.xlu0 %v378, 64
  %v569 = vpop.permute.xlu0 %568
  %571 = vrot.lane.b32.xlu0 %v534, 96
  %v572 = vpop.permute.xlu0 %571
  %574 = vrot.lane.b32.xlu0 %v378, 96
  %v575 = vpop.permute.xlu0 %574
  %vm577 = vcmask 261120
  %v578 = vsel %vm577, %v377, %v539
  %vm579 = vcmask 523264
  %v580 = vsel %vm579, %v578, %v543
  %vm581 = vcmask 785408
  %v582 = vsel %vm581, %v580, %v546
  %v583 = vsel %vm577, %v549, %v552
  %v584 = vsel %vm579, %v583, %v555
  %v585 = vsel %vm581, %v584, %v533
  %v586 = vsel %vm577, %v378, %v559
  %v587 = vsel %vm579, %v586, %v563
  %v588 = vsel %vm581, %v587, %v566
  %v589 = vsel %vm577, %v569, %v572
  %v590 = vsel %vm579, %v589, %v575
  %v591 = vsel %vm581, %v590, %v534
  %593 = vrot.lane.b32.xlu0 %v535, 32
  %v594 = vpop.permute.xlu0 %593
  %597 = vrot.lane.b32.xlu0 %v379, 32
  %v598 = vpop.permute.xlu0 %597
  %600 = vrot.lane.b32.xlu0 %v535, 64
  %v601 = vpop.permute.xlu0 %600
  %603 = vrot.lane.b32.xlu0 %v379, 64
  %v604 = vpop.permute.xlu0 %603
  %606 = vrot.lane.b32.xlu0 %v535, 96
  %v607 = vpop.permute.xlu0 %606
  %609 = vrot.lane.b32.xlu0 %v379, 96
  %v610 = vpop.permute.xlu0 %609
  %613 = vrot.lane.b32.xlu0 %v536, 32
  %v614 = vpop.permute.xlu0 %613
  %617 = vrot.lane.b32.xlu0 %v380, 32
  %v618 = vpop.permute.xlu0 %617
  %620 = vrot.lane.b32.xlu0 %v536, 64
  %v621 = vpop.permute.xlu0 %620
  %623 = vrot.lane.b32.xlu0 %v380, 64
  %v624 = vpop.permute.xlu0 %623
  %626 = vrot.lane.b32.xlu0 %v536, 96
  %v627 = vpop.permute.xlu0 %626
  %629 = vrot.lane.b32.xlu0 %v380, 96
  %v630 = vpop.permute.xlu0 %629
  %v632 = vsel %vm577, %v379, %v594
  %v633 = vsel %vm579, %v632, %v598
  %v634 = vsel %vm581, %v633, %v601
  %v635 = vsel %vm577, %v604, %v607
  %v636 = vsel %vm579, %v635, %v610
  %v637 = vsel %vm581, %v636, %v535
  %v638 = vsel %vm577, %v380, %v614
  %v639 = vsel %vm579, %v638, %v618
  %v640 = vsel %vm581, %v639, %v621
  %v641 = vsel %vm577, %v624, %v627
  %v642 = vsel %vm579, %v641, %v630
  %v643 = vsel %vm581, %v642, %v536
  %v652 = vcombine.low %v582, %v585
  %v653 = vcombine.low %v588, %v591
  %v654 = vcombine.low %v634, %v637
  %v655 = vcombine.low %v640, %v643
  %660 = vst [vmem:[%s3] sm:$0xff] %v652
  %661 = vst [vmem:[%s3 + $0x8] sm:$0xff] %v653
  %662 = vst [vmem:[%s3 + $0x10] sm:$0xff] %v654
  %663 = vst [vmem:[%s3 + $0x18] sm:$0xff] %v655
  %s664 = scalar_lea.vmem %s0, 16
  %v665 = vld [vmem:[%s664] sm:$0xff]
  %v666 = vld [vmem:[%s664 + $0x8] sm:$0xff]
  %v667 = vld [vmem:[%s2] sm:$0xf]
  %v668 = vld [vmem:[%s74] sm:$0xf]
  %v669 = vld [vmem:[%s1] sm:$0xf]
  %v670 = vld [vmem:[%s77] sm:$0xf]
  %672 = vset.pattern.permute.xlu0 0
  %673 = vperm.xlu0 %672, %v669
  %v674 = vpop.permute.xlu0 %673
  %v678 = vlaneseq
  %v679 = vshrl.u32 %v678, 7
  %v680 = vsub.s32 0, %v679
  %v681 = vrot.slane %v665, %v680
  %v682 = vlaneseq
  %v683 = vshrl.u32 %v682, 7
  %v684 = vsub.s32 4, %v683
  %v685 = vrot.slane %v665, %v684
  %v686 = vlaneseq
  %v687 = vshrl.u32 %v686, 7
  %v688 = vsub.s32 0, %v687
  %v689 = vrot.slane %v666, %v688
  %v690 = vlaneseq
  %v691 = vshrl.u32 %v690, 7
  %v692 = vsub.s32 4, %v691
  %v693 = vrot.slane %v666, %v692
  %v698 = vlaneseq
  %v699 = vshrl.u32 %v698, 7
  %v700 = vsub.s32 0, %v699
  %v701 = vrot.slane %v681, %v700
  %v702 = vlaneseq
  %v703 = vshrl.u32 %v702, 7
  %v704 = vsub.s32 0, %v703
  %v705 = vrot.slane %v685, %v704
  %v706 = vlaneseq
  %v707 = vshrl.u32 %v706, 7
  %v708 = vsub.s32 0, %v707
  %v709 = vrot.slane %v689, %v708
  %v710 = vlaneseq
  %v711 = vshrl.u32 %v710, 7
  %v712 = vsub.s32 0, %v711
  %v713 = vrot.slane %v693, %v712
  %v714 = vmul.f32 %v674, %v701
  %v715 = vmul.f32 %v674, %v705
  %v716 = vmul.f32 %v674, %v709
  %v717 = vmul.f32 %v674, %v713
  %v718 = vadd.f32 %v714, 0.0
  %v719 = vadd.f32 %v715, 0.0
  %v720 = vadd.f32 %v716, 0.0
  %v721 = vadd.f32 %v717, 0.0
  %723 = vset.pattern.permute.xlu0 0
  %724 = vperm.xlu0 %723, %v670
  %v725 = vpop.permute.xlu0 %724
  %v727 = vmul.f32 %v725, %v701
  %v728 = vmul.f32 %v725, %v705
  %v729 = vmul.f32 %v725, %v709
  %v730 = vmul.f32 %v725, %v713
  %v731 = vadd.f32 %v727, 0.0
  %v732 = vadd.f32 %v728, 0.0
  %v733 = vadd.f32 %v729, 0.0
  %v734 = vadd.f32 %v730, 0.0
  %735 = vset.pattern.permute.xlu0 1
  %736 = vperm.xlu0 %735, %v669
  %v737 = vpop.permute.xlu0 %736
  %v739 = vlaneseq
  %v740 = vshrl.u32 %v739, 7
  %v741 = vsub.s32 1, %v740
  %v742 = vrot.slane %v665, %v741
  %v743 = vlaneseq
  %v744 = vshrl.u32 %v743, 7
  %v745 = vsub.s32 5, %v744
  %v746 = vrot.slane %v665, %v745
  %v747 = vlaneseq
  %v748 = vshrl.u32 %v747, 7
  %v749 = vsub.s32 1, %v748
  %v750 = vrot.slane %v666, %v749
  %v751 = vlaneseq
  %v752 = vshrl.u32 %v751, 7
  %v753 = vsub.s32 5, %v752
  %v754 = vrot.slane %v666, %v753
  %v759 = vlaneseq
  %v760 = vshrl.u32 %v759, 7
  %v761 = vsub.s32 1, %v760
  %v762 = vrot.slane %v742, %v761
  %v763 = vlaneseq
  %v764 = vshrl.u32 %v763, 7
  %v765 = vsub.s32 1, %v764
  %v766 = vrot.slane %v746, %v765
  %v767 = vlaneseq
  %v768 = vshrl.u32 %v767, 7
  %v769 = vsub.s32 1, %v768
  %v770 = vrot.slane %v750, %v769
  %v771 = vlaneseq
  %v772 = vshrl.u32 %v771, 7
  %v773 = vsub.s32 1, %v772
  %v774 = vrot.slane %v754, %v773
  %v775 = vmul.f32 %v737, %v762
  %v776 = vmul.f32 %v737, %v766
  %v777 = vmul.f32 %v737, %v770
  %v778 = vmul.f32 %v737, %v774
  %v779 = vadd.f32 %v718, %v775
  %v780 = vadd.f32 %v719, %v776
  %v781 = vadd.f32 %v720, %v777
  %v782 = vadd.f32 %v721, %v778
  %783 = vset.pattern.permute.xlu0 1
  %784 = vperm.xlu0 %783, %v670
  %v785 = vpop.permute.xlu0 %784
  %v787 = vmul.f32 %v785, %v762
  %v788 = vmul.f32 %v785, %v766
  %v789 = vmul.f32 %v785, %v770
  %v790 = vmul.f32 %v785, %v774
  %v791 = vadd.f32 %v731, %v787
  %v792 = vadd.f32 %v732, %v788
  %v793 = vadd.f32 %v733, %v789
  %v794 = vadd.f32 %v734, %v790
  %795 = vset.pattern.permute.xlu0 2
  %796 = vperm.xlu0 %795, %v669
  %v797 = vpop.permute.xlu0 %796
  %v799 = vlaneseq
  %v800 = vshrl.u32 %v799, 7
  %v801 = vsub.s32 2, %v800
  %v802 = vrot.slane %v665, %v801
  %v803 = vlaneseq
  %v804 = vshrl.u32 %v803, 7
  %v805 = vsub.s32 6, %v804
  %v806 = vrot.slane %v665, %v805
  %v807 = vlaneseq
  %v808 = vshrl.u32 %v807, 7
  %v809 = vsub.s32 2, %v808
  %v810 = vrot.slane %v666, %v809
  %v811 = vlaneseq
  %v812 = vshrl.u32 %v811, 7
  %v813 = vsub.s32 6, %v812
  %v814 = vrot.slane %v666, %v813
  %v819 = vlaneseq
  %v820 = vshrl.u32 %v819, 7
  %v821 = vsub.s32 2, %v820
  %v822 = vrot.slane %v802, %v821
  %v823 = vlaneseq
  %v824 = vshrl.u32 %v823, 7
  %v825 = vsub.s32 2, %v824
  %v826 = vrot.slane %v806, %v825
  %v827 = vlaneseq
  %v828 = vshrl.u32 %v827, 7
  %v829 = vsub.s32 2, %v828
  %v830 = vrot.slane %v810, %v829
  %v831 = vlaneseq
  %v832 = vshrl.u32 %v831, 7
  %v833 = vsub.s32 2, %v832
  %v834 = vrot.slane %v814, %v833
  %v835 = vmul.f32 %v797, %v822
  %v836 = vmul.f32 %v797, %v826
  %v837 = vmul.f32 %v797, %v830
  %v838 = vmul.f32 %v797, %v834
  %v839 = vadd.f32 %v779, %v835
  %v840 = vadd.f32 %v780, %v836
  %v841 = vadd.f32 %v781, %v837
  %v842 = vadd.f32 %v782, %v838
  %843 = vset.pattern.permute.xlu0 2
  %844 = vperm.xlu0 %843, %v670
  %v845 = vpop.permute.xlu0 %844
  %v847 = vmul.f32 %v845, %v822
  %v848 = vmul.f32 %v845, %v826
  %v849 = vmul.f32 %v845, %v830
  %v850 = vmul.f32 %v845, %v834
  %v851 = vadd.f32 %v791, %v847
  %v852 = vadd.f32 %v792, %v848
  %v853 = vadd.f32 %v793, %v849
  %v854 = vadd.f32 %v794, %v850
  %855 = vset.pattern.permute.xlu0 3
  %856 = vperm.xlu0 %855, %v669
  %v857 = vpop.permute.xlu0 %856
  %v859 = vlaneseq
  %v860 = vshrl.u32 %v859, 7
  %v861 = vsub.s32 3, %v860
  %v862 = vrot.slane %v665, %v861
  %v863 = vlaneseq
  %v864 = vshrl.u32 %v863, 7
  %v865 = vsub.s32 7, %v864
  %v866 = vrot.slane %v665, %v865
  %v867 = vlaneseq
  %v868 = vshrl.u32 %v867, 7
  %v869 = vsub.s32 3, %v868
  %v870 = vrot.slane %v666, %v869
  %v871 = vlaneseq
  %v872 = vshrl.u32 %v871, 7
  %v873 = vsub.s32 7, %v872
  %v874 = vrot.slane %v666, %v873
  %v879 = vlaneseq
  %v880 = vshrl.u32 %v879, 7
  %v881 = vsub.s32 3, %v880
  %v882 = vrot.slane %v862, %v881
  %v883 = vlaneseq
  %v884 = vshrl.u32 %v883, 7
  %v885 = vsub.s32 3, %v884
  %v886 = vrot.slane %v866, %v885
  %v887 = vlaneseq
  %v888 = vshrl.u32 %v887, 7
  %v889 = vsub.s32 3, %v888
  %v890 = vrot.slane %v870, %v889
  %v891 = vlaneseq
  %v892 = vshrl.u32 %v891, 7
  %v893 = vsub.s32 3, %v892
  %v894 = vrot.slane %v874, %v893
  %v895 = vmul.f32 %v857, %v882
  %v896 = vmul.f32 %v857, %v886
  %v897 = vmul.f32 %v857, %v890
  %v898 = vmul.f32 %v857, %v894
  %v899 = vadd.f32 %v839, %v895
  %v900 = vadd.f32 %v840, %v896
  %v901 = vadd.f32 %v841, %v897
  %v902 = vadd.f32 %v842, %v898
  %903 = vset.pattern.permute.xlu0 3
  %904 = vperm.xlu0 %903, %v670
  %v905 = vpop.permute.xlu0 %904
  %v907 = vmul.f32 %v905, %v882
  %v908 = vmul.f32 %v905, %v886
  %v909 = vmul.f32 %v905, %v890
  %v910 = vmul.f32 %v905, %v894
  %v911 = vadd.f32 %v851, %v907
  %v912 = vadd.f32 %v852, %v908
  %v913 = vadd.f32 %v853, %v909
  %v914 = vadd.f32 %v854, %v910
  %916 = vset.pattern.permute.xlu0 0
  %917 = vperm.xlu0 %916, %v667
  %v918 = vpop.permute.xlu0 %917
  %v920 = vadd.f32 %v899, %v918
  %v921 = vadd.f32 %v900, %v918
  %v922 = vadd.f32 %v901, %v918
  %v923 = vadd.f32 %v902, %v918
  %925 = vset.pattern.permute.xlu0 0
  %926 = vperm.xlu0 %925, %v668
  %v927 = vpop.permute.xlu0 %926
  %v929 = vadd.f32 %v911, %v927
  %v930 = vadd.f32 %v912, %v927
  %v931 = vadd.f32 %v913, %v927
  %v932 = vadd.f32 %v914, %v927
  %v933 = vsel %vm345, %v920, %v929
  %v934 = vsel %vm346, %v921, %v930
  %v935 = vsel %vm347, %v922, %v931
  %v936 = vsel %vm348, %v923, %v932
  %v937 = vxor.u32 %v933, 2147483648
  %v938 = vxor.u32 %v934, 2147483648
  %v939 = vxor.u32 %v935, 2147483648
  %v940 = vxor.u32 %v936, 2147483648
  %v941 = vmul.f32 %v937, 1.442695
  %v942 = vpow.pop %v941
  %v943 = vmul.f32 %v938, 1.442695
  %v944 = vpow.pop %v943
  %v945 = vmul.f32 %v939, 1.442695
  %v946 = vpow.pop %v945
  %v947 = vmul.f32 %v940, 1.442695
  %v948 = vpow.pop %v947
  %v949 = vadd.f32 %v942, 1.0
  %v950 = vadd.f32 %v944, 1.0
  %v951 = vadd.f32 %v946, 1.0
  %v952 = vadd.f32 %v948, 1.0
  %v953 = vrcp.pop %v949
  %v954 = vmul.f32 1.0, %v953
  %v955 = vrcp.pop %v950
  %v956 = vmul.f32 1.0, %v955
  %v957 = vrcp.pop %v951
  %v958 = vmul.f32 1.0, %v957
  %v959 = vrcp.pop %v952
  %v960 = vmul.f32 1.0, %v959
  %v961 = vmul.f32 %v933, %v954
  %v962 = vmul.f32 %v934, %v956
  %v963 = vmul.f32 %v935, %v958
  %v964 = vmul.f32 %v936, %v960
  %v965 = vld [vmem:[%s381] sm:$0xf]
  %v966 = vld [vmem:[%s383] sm:$0xf]
  %v967 = vld [vmem:[%s385] sm:$0xf]
  %v968 = vld [vmem:[%s387] sm:$0xf]
  %970 = vset.pattern.permute.xlu0 0
  %971 = vperm.xlu0 %970, %v967
  %v972 = vpop.permute.xlu0 %971
  %v974 = vmul.f32 %v972, %v701
  %v975 = vmul.f32 %v972, %v705
  %v976 = vmul.f32 %v972, %v709
  %v977 = vmul.f32 %v972, %v713
  %v978 = vadd.f32 %v974, 0.0
  %v979 = vadd.f32 %v975, 0.0
  %v980 = vadd.f32 %v976, 0.0
  %v981 = vadd.f32 %v977, 0.0
  %983 = vset.pattern.permute.xlu0 0
  %984 = vperm.xlu0 %983, %v968
  %v985 = vpop.permute.xlu0 %984
  %v987 = vmul.f32 %v985, %v701
  %v988 = vmul.f32 %v985, %v705
  %v989 = vmul.f32 %v985, %v709
  %v990 = vmul.f32 %v985, %v713
  %v991 = vadd.f32 %v987, 0.0
  %v992 = vadd.f32 %v988, 0.0
  %v993 = vadd.f32 %v989, 0.0
  %v994 = vadd.f32 %v990, 0.0
  %995 = vset.pattern.permute.xlu0 1
  %996 = vperm.xlu0 %995, %v967
  %v997 = vpop.permute.xlu0 %996
  %v999 = vmul.f32 %v997, %v762
  %v1000 = vmul.f32 %v997, %v766
  %v1001 = vmul.f32 %v997, %v770
  %v1002 = vmul.f32 %v997, %v774
  %v1003 = vadd.f32 %v978, %v999
  %v1004 = vadd.f32 %v979, %v1000
  %v1005 = vadd.f32 %v980, %v1001
  %v1006 = vadd.f32 %v981, %v1002
  %1007 = vset.pattern.permute.xlu0 1
  %1008 = vperm.xlu0 %1007, %v968
  %v1009 = vpop.permute.xlu0 %1008
  %v1011 = vmul.f32 %v1009, %v762
  %v1012 = vmul.f32 %v1009, %v766
  %v1013 = vmul.f32 %v1009, %v770
  %v1014 = vmul.f32 %v1009, %v774
  %v1015 = vadd.f32 %v991, %v1011
  %v1016 = vadd.f32 %v992, %v1012
  %v1017 = vadd.f32 %v993, %v1013
  %v1018 = vadd.f32 %v994, %v1014
  %1019 = vset.pattern.permute.xlu0 2
  %1020 = vperm.xlu0 %1019, %v967
  %v1021 = vpop.permute.xlu0 %1020
  %v1023 = vmul.f32 %v1021, %v822
  %v1024 = vmul.f32 %v1021, %v826
  %v1025 = vmul.f32 %v1021, %v830
  %v1026 = vmul.f32 %v1021, %v834
  %v1027 = vadd.f32 %v1003, %v1023
  %v1028 = vadd.f32 %v1004, %v1024
  %v1029 = vadd.f32 %v1005, %v1025
  %v1030 = vadd.f32 %v1006, %v1026
  %1031 = vset.pattern.permute.xlu0 2
  %1032 = vperm.xlu0 %1031, %v968
  %v1033 = vpop.permute.xlu0 %1032
  %v1035 = vmul.f32 %v1033, %v822
  %v1036 = vmul.f32 %v1033, %v826
  %v1037 = vmul.f32 %v1033, %v830
  %v1038 = vmul.f32 %v1033, %v834
  %v1039 = vadd.f32 %v1015, %v1035
  %v1040 = vadd.f32 %v1016, %v1036
  %v1041 = vadd.f32 %v1017, %v1037
  %v1042 = vadd.f32 %v1018, %v1038
  %1043 = vset.pattern.permute.xlu0 3
  %1044 = vperm.xlu0 %1043, %v967
  %v1045 = vpop.permute.xlu0 %1044
  %v1047 = vmul.f32 %v1045, %v882
  %v1048 = vmul.f32 %v1045, %v886
  %v1049 = vmul.f32 %v1045, %v890
  %v1050 = vmul.f32 %v1045, %v894
  %v1051 = vadd.f32 %v1027, %v1047
  %v1052 = vadd.f32 %v1028, %v1048
  %v1053 = vadd.f32 %v1029, %v1049
  %v1054 = vadd.f32 %v1030, %v1050
  %1055 = vset.pattern.permute.xlu0 3
  %1056 = vperm.xlu0 %1055, %v968
  %v1057 = vpop.permute.xlu0 %1056
  %v1059 = vmul.f32 %v1057, %v882
  %v1060 = vmul.f32 %v1057, %v886
  %v1061 = vmul.f32 %v1057, %v890
  %v1062 = vmul.f32 %v1057, %v894
  %v1063 = vadd.f32 %v1039, %v1059
  %v1064 = vadd.f32 %v1040, %v1060
  %v1065 = vadd.f32 %v1041, %v1061
  %v1066 = vadd.f32 %v1042, %v1062
  %1068 = vset.pattern.permute.xlu0 0
  %1069 = vperm.xlu0 %1068, %v965
  %v1070 = vpop.permute.xlu0 %1069
  %v1072 = vadd.f32 %v1051, %v1070
  %v1073 = vadd.f32 %v1052, %v1070
  %v1074 = vadd.f32 %v1053, %v1070
  %v1075 = vadd.f32 %v1054, %v1070
  %1077 = vset.pattern.permute.xlu0 0
  %1078 = vperm.xlu0 %1077, %v966
  %v1079 = vpop.permute.xlu0 %1078
  %v1081 = vadd.f32 %v1063, %v1079
  %v1082 = vadd.f32 %v1064, %v1079
  %v1083 = vadd.f32 %v1065, %v1079
  %v1084 = vadd.f32 %v1066, %v1079
  %v1085 = vsel %vm345, %v1072, %v1081
  %v1086 = vsel %vm346, %v1073, %v1082
  %v1087 = vsel %vm347, %v1074, %v1083
  %v1088 = vsel %vm348, %v1075, %v1084
  %v1089 = vxor.u32 %v1085, 2147483648
  %v1090 = vxor.u32 %v1086, 2147483648
  %v1091 = vxor.u32 %v1087, 2147483648
  %v1092 = vxor.u32 %v1088, 2147483648
  %v1093 = vmul.f32 %v1089, 1.442695
  %v1094 = vpow.pop %v1093
  %v1095 = vmul.f32 %v1090, 1.442695
  %v1096 = vpow.pop %v1095
  %v1097 = vmul.f32 %v1091, 1.442695
  %v1098 = vpow.pop %v1097
  %v1099 = vmul.f32 %v1092, 1.442695
  %v1100 = vpow.pop %v1099
  %v1101 = vadd.f32 %v1094, 1.0
  %v1102 = vadd.f32 %v1096, 1.0
  %v1103 = vadd.f32 %v1098, 1.0
  %v1104 = vadd.f32 %v1100, 1.0
  %v1105 = vrcp.pop %v1101
  %v1106 = vmul.f32 1.0, %v1105
  %v1107 = vrcp.pop %v1102
  %v1108 = vmul.f32 1.0, %v1107
  %v1109 = vrcp.pop %v1103
  %v1110 = vmul.f32 1.0, %v1109
  %v1111 = vrcp.pop %v1104
  %v1112 = vmul.f32 1.0, %v1111
  %v1113 = vmul.f32 %v1085, %v1106
  %v1114 = vmul.f32 %v1086, %v1108
  %v1115 = vmul.f32 %v1087, %v1110
  %v1116 = vmul.f32 %v1088, %v1112
  %1118 = vrot.lane.b32.xlu0 %v1113, 32
  %v1119 = vpop.permute.xlu0 %1118
  %1122 = vrot.lane.b32.xlu0 %v961, 32
  %v1123 = vpop.permute.xlu0 %1122
  %1125 = vrot.lane.b32.xlu0 %v1113, 64
  %v1126 = vpop.permute.xlu0 %1125
  %1128 = vrot.lane.b32.xlu0 %v961, 64
  %v1129 = vpop.permute.xlu0 %1128
  %1131 = vrot.lane.b32.xlu0 %v1113, 96
  %v1132 = vpop.permute.xlu0 %1131
  %1134 = vrot.lane.b32.xlu0 %v961, 96
  %v1135 = vpop.permute.xlu0 %1134
  %1138 = vrot.lane.b32.xlu0 %v1114, 32
  %v1139 = vpop.permute.xlu0 %1138
  %1142 = vrot.lane.b32.xlu0 %v962, 32
  %v1143 = vpop.permute.xlu0 %1142
  %1145 = vrot.lane.b32.xlu0 %v1114, 64
  %v1146 = vpop.permute.xlu0 %1145
  %1148 = vrot.lane.b32.xlu0 %v962, 64
  %v1149 = vpop.permute.xlu0 %1148
  %1151 = vrot.lane.b32.xlu0 %v1114, 96
  %v1152 = vpop.permute.xlu0 %1151
  %1154 = vrot.lane.b32.xlu0 %v962, 96
  %v1155 = vpop.permute.xlu0 %1154
  %v1157 = vsel %vm577, %v961, %v1119
  %v1158 = vsel %vm579, %v1157, %v1123
  %v1159 = vsel %vm581, %v1158, %v1126
  %v1160 = vsel %vm577, %v1129, %v1132
  %v1161 = vsel %vm579, %v1160, %v1135
  %v1162 = vsel %vm581, %v1161, %v1113
  %v1163 = vsel %vm577, %v962, %v1139
  %v1164 = vsel %vm579, %v1163, %v1143
  %v1165 = vsel %vm581, %v1164, %v1146
  %v1166 = vsel %vm577, %v1149, %v1152
  %v1167 = vsel %vm579, %v1166, %v1155
  %v1168 = vsel %vm581, %v1167, %v1114
  %1170 = vrot.lane.b32.xlu0 %v1115, 32
  %v1171 = vpop.permute.xlu0 %1170
  %1174 = vrot.lane.b32.xlu0 %v963, 32
  %v1175 = vpop.permute.xlu0 %1174
  %1177 = vrot.lane.b32.xlu0 %v1115, 64
  %v1178 = vpop.permute.xlu0 %1177
  %1180 = vrot.lane.b32.xlu0 %v963, 64
  %v1181 = vpop.permute.xlu0 %1180
  %1183 = vrot.lane.b32.xlu0 %v1115, 96
  %v1184 = vpop.permute.xlu0 %1183
  %1186 = vrot.lane.b32.xlu0 %v963, 96
  %v1187 = vpop.permute.xlu0 %1186
  %1190 = vrot.lane.b32.xlu0 %v1116, 32
  %v1191 = vpop.permute.xlu0 %1190
  %1194 = vrot.lane.b32.xlu0 %v964, 32
  %v1195 = vpop.permute.xlu0 %1194
  %1197 = vrot.lane.b32.xlu0 %v1116, 64
  %v1198 = vpop.permute.xlu0 %1197
  %1200 = vrot.lane.b32.xlu0 %v964, 64
  %v1201 = vpop.permute.xlu0 %1200
  %1203 = vrot.lane.b32.xlu0 %v1116, 96
  %v1204 = vpop.permute.xlu0 %1203
  %1206 = vrot.lane.b32.xlu0 %v964, 96
  %v1207 = vpop.permute.xlu0 %1206
  %v1209 = vsel %vm577, %v963, %v1171
  %v1210 = vsel %vm579, %v1209, %v1175
  %v1211 = vsel %vm581, %v1210, %v1178
  %v1212 = vsel %vm577, %v1181, %v1184
  %v1213 = vsel %vm579, %v1212, %v1187
  %v1214 = vsel %vm581, %v1213, %v1115
  %v1215 = vsel %vm577, %v964, %v1191
  %v1216 = vsel %vm579, %v1215, %v1195
  %v1217 = vsel %vm581, %v1216, %v1198
  %v1218 = vsel %vm577, %v1201, %v1204
  %v1219 = vsel %vm579, %v1218, %v1207
  %v1220 = vsel %vm581, %v1219, %v1116
  %v1229 = vcombine.low %v1159, %v1162
  %v1230 = vcombine.low %v1165, %v1168
  %v1231 = vcombine.low %v1211, %v1214
  %v1232 = vcombine.low %v1217, %v1220
  %s1237 = scalar_lea.vmem %s3, 32
  %1238 = vst [vmem:[%s1237] sm:$0xff] %v1229
  %1239 = vst [vmem:[%s1237 + $0x8] sm:$0xff] %v1230
  %1240 = vst [vmem:[%s1237 + $0x10] sm:$0xff] %v1231
  %1241 = vst [vmem:[%s1237 + $0x18] sm:$0xff] %v1232
  // Predicated region
  $region14: #{pixel_shuffle_upsample.1} parent=0 // pred_check
    _
  $region15: #{pixel_shuffle_upsample.1} parent=0 // pred_check_branch
    %1243 = sbr.rel (0) target = $region17
  $region16: #{pixel_shuffle_upsample.1} parent=0 // pred_region
    _
  $region17: #{pixel_shuffle_upsample.1} parent=0 // pred_fallthru
    _
  // Predicated region
  $region18: #{pixel_shuffle_upsample.1} parent=0 // pred_check
    _
  $region19: #{pixel_shuffle_upsample.1} parent=0 // pred_check_branch
    %1245 = sbr.rel (0) target = $region21
  $region20: #{pixel_shuffle_upsample.1} parent=0 // pred_region
    _
  $region21: #{pixel_shuffle_upsample.1} parent=0 // pred_fallthru
    _

</llo_original>
